<compile_context>
chip_gen: v7x
topology: tpu7x:2x2x1
jax: 0.10.0
libtpu: 0.0.40
codegen_flags: <defaults>
</compile_context>

<pallas_src>
import math

import jax
import jax.numpy as jnp
from jax.experimental import pallas as pl
from jax.experimental.pallas import tpu as pltpu


def _round_up(v, m):
    return ((v + m - 1) // m) * m


def _mxu_is_256_wide():
    """True on v6e / v7x (256-wide MXU); False on v5e/v5p/v4 and older."""
    try:
        kind = jax.devices()[0].device_kind.lower()
    except Exception:
        return True
    for tag in ("v2", "v3", "v4", "v5"):
        if tag in kind:
            return False
    return True


# ----------------------------------------------------------------------------
# Pallas kernel: TB batch elements per grid step.
# ----------------------------------------------------------------------------
def _lifter_kernel(xf_ref, wq_ref, bq_ref, wkv_ref, bkv_ref, ones_ref,
                   wo1_ref, bo1_ref, w2_ref, b2_ref, out_ref):
    K, TB, C = xf_ref.shape
    H = wq_ref.shape[1]
    wide = ones_ref.shape[0] == 2 * H          # static (trace-time) dispatch

    xc = xf_ref[K // 2]                         # (TB, C)   bf16 center points
    xf = xf_ref[...].reshape(K * TB, C)         # (K*TB, C) bf16 all points

    # fused (q_proj o MHA in-proj-q); 1/sqrt(head_dim) folded into W/b.
    q = jnp.dot(xc, wq_ref[...],
                preferred_element_type=jnp.float32) + bq_ref[...]         # (TB, H)

    # fused [k_proj o in-proj-k | v_proj o in-proj-v] in one N=2H matmul.
    kv = jnp.dot(xf, wkv_ref[...],
                 preferred_element_type=jnp.float32) + bkv_ref[...]       # (K*TB, 2H)
    k3 = kv[:, :H].reshape(K, TB, H)                                      # (K, TB, H)
    v3 = kv[:, H:].reshape(K, TB, H)                                      # (K, TB, H)

    # Per-head scores, kept lane-wide: elementwise q*k followed by a
    # block-diagonal ones matmul performs the segmented per-head lane
    # reduction (score replicated across each head's head_dim lanes).
    prod = (q[None, :, :] * k3).astype(jnp.bfloat16).reshape(K * TB, H)   # (K*TB, H)

    if wide:
        # v6e/v7x: pair the two row-halves along lanes so the ones matmul is
        # one 256-wide column pass with half the MXU row pushes.
        half = (K // 2) * TB
        paired = jnp.concatenate([prod[:half, :], prod[half:, :]], axis=-1)   # (half, 2H)
        s2 = jnp.dot(paired, ones_ref[...],
                     preferred_element_type=jnp.float32)                      # (half, 2H)
        s = jnp.concatenate([s2[:, :H], s2[:, H:]], axis=0).reshape(K, TB, H)
    else:
        # v5e: 128-wide MXU, keep the (H, H) ones form.
        s = jnp.dot(prod, ones_ref[...],
                    preferred_element_type=jnp.float32).reshape(K, TB, H)

    # Softmax over the K neighborhood axis (leading axis -> pure VPU).
    m = jnp.max(s, axis=0, keepdims=True)                                 # (1, TB, H)
    e = jnp.exp(s - m)                                                    # (K, TB, H)
    denom = jnp.sum(e, axis=0)                                            # (TB, H)
    ctx = jnp.sum(e * v3, axis=0) * pl.reciprocal(denom, approx=True)     # (TB, H)

    # fused (MHA out-proj o FFN linear-1) -> ReLU -> FFN linear-2.
    h1 = jnp.maximum(
        jnp.dot(ctx.astype(jnp.bfloat16), wo1_ref[...],
                preferred_element_type=jnp.float32) + bo1_ref[...], 0.0)  # (TB, H)
    y = jnp.dot(h1.astype(jnp.bfloat16), w2_ref[...],
                preferred_element_type=jnp.float32) + b2_ref[...]         # (TB, C)

    # Lane-dense store: pack P=128/C row-groups along lanes so the output
    # block is 128-wide (unmasked vst, full-lane output DMA).
    P = out_ref.shape[-1] // C
    if P > 1:
        rows = TB // P
        y = jnp.concatenate([y[j * rows:(j + 1) * rows, :] for j in range(P)],
                            axis=-1)                                      # (TB/P, P*C)
    out_ref[...] = y.astype(out_ref.dtype)


# ----------------------------------------------------------------------------
# Wrapper
# ----------------------------------------------------------------------------
def point_feature_lifter(x, kparams, tb=None, wide_ones=None):
    """x: (B, K, C) float.  Returns (B, C) float32."""
    B, K, C = x.shape
    H = kparams["wq"].shape[1]

    # Output lane-packing factor (C=64 -> pack 2 rows into 128 lanes).
    P = 128 // C if (C < 128 and 128 % C == 0) else 1
    align = max(16, 8 * P)

    if wide_ones is None:
        wide_ones = _mxu_is_256_wide()
    wide_ones = wide_ones and (K % 2 == 0) and (H % 128 == 0)

    # Batch-tile selection: big tiles (amortize per-step overhead), capped at
    # 512 (v7x VMEM), and >=2 (even-ish) tiles so v7x can use both TensorCores.
    TB_MAX = 512
    if tb is not None:
        TB = _round_up(tb, align)
    elif B <= 2 * TB_MAX:
        TB = _round_up(max(1, -(-B // 2)), align)
    else:
        n = -(-B // TB_MAX)
        n += n % 2
        TB = _round_up(-(-B // n), align)
    TB = max(align, min(TB, _round_up(B, align)))
    n_tiles = -(-B // TB)
    B_pad = n_tiles * TB

    # Single input slab, K-major so the center row is a plain leading index
    # in-kernel; bf16 cast + transpose fuse into one wrapper pass.
    xb = jnp.transpose(x, (1, 0, 2)).astype(jnp.bfloat16)        # (K, B, C)
    if B_pad != B:
        xb = jnp.pad(xb, ((0, 0), (0, B_pad - B), (0, 0)))       # zero rows are safe

    ones = kparams["ones2"] if wide_ones else kparams["ones"]
    weights = [kparams["wq"], kparams["bq"], kparams["wkv"], kparams["bkv"],
               ones, kparams["wo1"], kparams["bo1"], kparams["w2"], kparams["b2"]]

    def wspec(a):
        nd = a.ndim
        return pl.BlockSpec(a.shape, lambda b, _nd=nd: (0,) * _nd)

    cost = pl.CostEstimate(
        flops=int(2 * B_pad * (C * H + K * C * 2 * H + K * H * H + H * H + H * C)),
        transcendentals=int(B_pad * (K * H + H)),
        bytes_accessed=int(B_pad * K * C * 2 + B_pad * C * 4
                           + sum(int(w.size) * w.dtype.itemsize for w in weights)),
    )

    out = pl.pallas_call(
        _lifter_kernel,
        out_shape=jax.ShapeDtypeStruct((B_pad // P, P * C), jnp.float32),
        grid_spec=pltpu.PrefetchScalarGridSpec(
            num_scalar_prefetch=0,
            grid=(n_tiles,),
            in_specs=[pl.BlockSpec((K, TB, C), lambda b: (0, b, 0))]
                     + [wspec(w) for w in weights],
            out_specs=pl.BlockSpec((TB // P, P * C), lambda b: (b, 0)),
        ),
        compiler_params=pltpu.CompilerParams(
            dimension_semantics=("parallel",),
            vmem_limit_bytes=48 * 1024 * 1024),
        cost_estimate=cost,
    )(xb, *weights)

    if P > 1:
        # Un-interleave the lane-packed output (pure layout plumbing, tiny).
        out = (out.reshape(n_tiles, TB // P, P, C)
                  .transpose(0, 2, 1, 3)
                  .reshape(B_pad, C))
    return out[:B]


# ----------------------------------------------------------------------------
# Deterministic parameter construction (PyTorch layouts) + algebraic fusion.
# ----------------------------------------------------------------------------
def make_raw_params(key, feature_dim, hidden_dim):
    ks = jax.random.split(key, 16)
    scale = 0.05

    def w(k, out_d, in_d):  # PyTorch nn.Linear weight layout (out, in)
        return jax.random.normal(k, (out_d, in_d), jnp.float32) * scale

    def b(k, out_d):
        return jax.random.normal(k, (out_d,), jnp.float32) * scale

    return {
        "q_w": w(ks[0], hidden_dim, feature_dim), "q_b": b(ks[1], hidden_dim),
        "k_w": w(ks[2], hidden_dim, feature_dim), "k_b": b(ks[3], hidden_dim),
        "v_w": w(ks[4], hidden_dim, feature_dim), "v_b": b(ks[5], hidden_dim),
        "in_w": w(ks[6], 3 * hidden_dim, hidden_dim),     # MHA in_proj_weight
        "in_b": b(ks[7], 3 * hidden_dim),                 # MHA in_proj_bias
        "out_w": w(ks[8], hidden_dim, hidden_dim), "out_b": b(ks[9], hidden_dim),
        "ffn1_w": w(ks[10], hidden_dim, hidden_dim), "ffn1_b": b(ks[11], hidden_dim),
        "ffn2_w": w(ks[12], feature_dim, hidden_dim), "ffn2_b": b(ks[13], feature_dim),
    }


def fuse_params(raw, feature_dim, hidden_dim, num_heads):
    H = hidden_dim
    hd = H // num_heads
    scale = 1.0 / math.sqrt(hd)

    wiq, wik, wiv = raw["in_w"][:H], raw["in_w"][H:2 * H], raw["in_w"][2 * H:]
    biq, bik, biv = raw["in_b"][:H], raw["in_b"][H:2 * H], raw["in_b"][2 * H:]

    # kernel layout is (in, out); fuse user q/k/v proj with MHA in-projections.
    wq_f = (raw["q_w"].T @ wiq.T) * scale                       # (C, H)
    bq_f = (raw["q_b"] @ wiq.T + biq) * scale                   # (H,)
    wk_f = raw["k_w"].T @ wik.T                                 # (C, H)
    bk_f = raw["k_b"] @ wik.T + bik
    wv_f = raw["v_w"].T @ wiv.T                                 # (C, H)
    bv_f = raw["v_b"] @ wiv.T + biv
    wkv = jnp.concatenate([wk_f, wv_f], axis=1)                 # (C, 2H)
    bkv = jnp.concatenate([bk_f, bv_f], axis=0)                 # (2H,)

    # fuse MHA out-projection with FFN linear-1 (exact: ReLU comes after).
    wo1 = raw["out_w"].T @ raw["ffn1_w"].T                      # (H, H)
    bo1 = raw["out_b"] @ raw["ffn1_w"].T + raw["ffn1_b"]        # (H,)
    w2 = raw["ffn2_w"].T                                        # (H, C)
    b2 = raw["ffn2_b"]                                          # (C,)

    # Block-diagonal ones: head h owns lanes [h*hd, (h+1)*hd).
    head_id = jnp.arange(H) // hd
    ones = (head_id[:, None] == head_id[None, :]).astype(jnp.bfloat16)    # (H, H)
    # Two-block version for the 256-wide-MXU (v6e/v7x) lane-paired variant.
    head_id2 = jnp.arange(2 * H) // hd
    ones2 = (head_id2[:, None] == head_id2[None, :]).astype(jnp.bfloat16)  # (2H, 2H)

    bf = jnp.bfloat16
    f32 = jnp.float32
    return {
        "wq": wq_f.astype(bf), "bq": bq_f[None, :].astype(f32),
        "wkv": wkv.astype(bf), "bkv": bkv[None, :].astype(f32),
        "ones": ones, "ones2": ones2,
        "wo1": wo1.astype(bf), "bo1": bo1[None, :].astype(f32),
        "w2": w2.astype(bf), "b2": b2[None, :].astype(f32),
    }


# ----------------------------------------------------------------------------
# Pure-JAX reference (mirrors the PyTorch forward exactly, f32, unfused).
# ----------------------------------------------------------------------------
def reference(x, raw, num_heads):
    B, K, C = x.shape

    def lin(v, W, bb):
        return v @ W.T + bb

    q = lin(x[:, K // 2], raw["q_w"], raw["q_b"])[:, None, :]    # (B, 1, H)
    k = lin(x, raw["k_w"], raw["k_b"])                           # (B, K, H)
    v = lin(x, raw["v_w"], raw["v_b"])                           # (B, K, H)

    H = q.shape[-1]
    hd = H // num_heads
    wi, bi = raw["in_w"], raw["in_b"]
    q2 = q @ wi[:H].T + bi[:H]
    k2 = k @ wi[H:2 * H].T + bi[H:2 * H]
    v2 = v @ wi[2 * H:].T + bi[2 * H:]

    q2 = q2.reshape(B, 1, num_heads, hd).transpose(0, 2, 1, 3)
    k2 = k2.reshape(B, K, num_heads, hd).transpose(0, 2, 1, 3)
    v2 = v2.reshape(B, K, num_heads, hd).transpose(0, 2, 1, 3)

    s = (q2 / jnp.sqrt(hd)) @ k2.transpose(0, 1, 3, 2)           # (B, h, 1, K)
    p = jax.nn.softmax(s, axis=-1)
    ctx = (p @ v2).transpose(0, 2, 1, 3).reshape(B, 1, H)[:, 0]  # (B, H)

    out = ctx @ raw["out_w"].T + raw["out_b"]
    h1 = jnp.maximum(out @ raw["ffn1_w"].T + raw["ffn1_b"], 0.0)
    return h1 @ raw["ffn2_w"].T + raw["ffn2_b"]


if __name__ == "__main__":
    B, K = 20, 8
    feature_dim, hidden_dim, num_heads = 64, 128, 4

    key = jax.random.PRNGKey(0)
    kx, kp = jax.random.split(key)
    x = jax.random.normal(kx, (B, K, feature_dim), jnp.float32)

    raw = make_raw_params(kp, feature_dim, hidden_dim)
    kparams = fuse_params(raw, feature_dim, hidden_dim, num_heads)

    # Default TB picker -> TB=16, 2 grid steps, batch padding 20 -> 32
    # (exercises the multi-tile grid, padding, wide/narrow ones dispatch and
    # the lane-packed output path).
    out = point_feature_lifter(x, kparams)
    out = jax.block_until_ready(out)

    ref = reference(x, raw, num_heads)
    assert out.shape == (B, feature_dim)
    err = float(jnp.max(jnp.abs(out - ref)))
    # Loose tolerance is intentional: bf16 logits/weights + approx reciprocal.
    assert jnp.allclose(out, ref, atol=2e-2, rtol=2e-2), f"max abs err {err}"

    print("KERNEL_OK")
</pallas_src>

<mosaic_0001>
module attributes {stable_mosaic.version = 11 : i64} {
  func.func @_lifter_kernel(%arg0: i32, %arg1: memref<8x16x64xbf16, #tpu.memory_space<vmem>>, %arg2: memref<64x128xbf16, #tpu.memory_space<vmem>>, %arg3: memref<1x128xf32, #tpu.memory_space<vmem>>, %arg4: memref<64x256xbf16, #tpu.memory_space<vmem>>, %arg5: memref<1x256xf32, #tpu.memory_space<vmem>>, %arg6: memref<256x256xbf16, #tpu.memory_space<vmem>>, %arg7: memref<128x128xbf16, #tpu.memory_space<vmem>>, %arg8: memref<1x128xf32, #tpu.memory_space<vmem>>, %arg9: memref<128x64xbf16, #tpu.memory_space<vmem>>, %arg10: memref<1x64xf32, #tpu.memory_space<vmem>>, %arg11: memref<8x128xf32, #tpu.memory_space<vmem>>) attributes {dimension_semantics = [#tpu.dimension_semantics<parallel>], iteration_bounds = array<i64: 2>, scalar_prefetch = 0 : i64, scratch_operands = 0 : i64, tpu.core_type = #tpu.core_type<tc>, window_params = [{transform_indices = @transform_0, window_bounds = array<i64: 8, 16, 64>}, {pipeline_mode = #tpu.pipeline_mode<synchronous>, transform_indices = @transform_1, window_bounds = array<i64: 64, 128>}, {pipeline_mode = #tpu.pipeline_mode<synchronous>, transform_indices = @transform_2, window_bounds = array<i64: 1, 128>}, {pipeline_mode = #tpu.pipeline_mode<synchronous>, transform_indices = @transform_3, window_bounds = array<i64: 64, 256>}, {pipeline_mode = #tpu.pipeline_mode<synchronous>, transform_indices = @transform_4, window_bounds = array<i64: 1, 256>}, {pipeline_mode = #tpu.pipeline_mode<synchronous>, transform_indices = @transform_5, window_bounds = array<i64: 256, 256>}, {pipeline_mode = #tpu.pipeline_mode<synchronous>, transform_indices = @transform_6, window_bounds = array<i64: 128, 128>}, {pipeline_mode = #tpu.pipeline_mode<synchronous>, transform_indices = @transform_7, window_bounds = array<i64: 1, 128>}, {pipeline_mode = #tpu.pipeline_mode<synchronous>, transform_indices = @transform_8, window_bounds = array<i64: 128, 64>}, {pipeline_mode = #tpu.pipeline_mode<synchronous>, transform_indices = @transform_9, window_bounds = array<i64: 1, 64>}, {transform_indices = @transform_10, window_bounds = array<i64: 8, 128>}]} {
    %c4 = arith.constant 4 : index
    %c0 = arith.constant 0 : index
    %c0_0 = arith.constant 0 : index
    %0 = vector.load %arg1[%c4, %c0, %c0_0] : memref<8x16x64xbf16, #tpu.memory_space<vmem>>, vector<1x16x64xbf16>
    %1 = vector.shape_cast %0 : vector<1x16x64xbf16> to vector<16x64xbf16>
    %c0_1 = arith.constant 0 : index
    %c0_2 = arith.constant 0 : index
    %c0_3 = arith.constant 0 : index
    %2 = vector.load %arg1[%c0_1, %c0_2, %c0_3] : memref<8x16x64xbf16, #tpu.memory_space<vmem>>, vector<8x16x64xbf16>
    %3 = vector.shape_cast %2 : vector<8x16x64xbf16> to vector<128x64xbf16>
    %c0_4 = arith.constant 0 : index
    %c0_5 = arith.constant 0 : index
    %4 = vector.load %arg2[%c0_4, %c0_5] : memref<64x128xbf16, #tpu.memory_space<vmem>>, vector<64x128xbf16>
    %cst = arith.constant dense<0.000000e+00> : vector<16x128xf32>
    %5 = tpu.matmul %1, %4, %cst {dimension_numbers = #tpu.dot_dimension_numbers<[1], [0], [0], [1], [0, 0, 1, 1], [], []>} : vector<16x64xbf16>, vector<64x128xbf16>, vector<16x128xf32> -> vector<16x128xf32>
    %c0_6 = arith.constant 0 : index
    %c0_7 = arith.constant 0 : index
    %6 = vector.load %arg3[%c0_6, %c0_7] : memref<1x128xf32, #tpu.memory_space<vmem>>, vector<1x128xf32>
    %7 = vector.broadcast %6 : vector<1x128xf32> to vector<16x128xf32>
    %8 = arith.addf %5, %7 : vector<16x128xf32>
    %c0_8 = arith.constant 0 : index
    %c0_9 = arith.constant 0 : index
    %9 = vector.load %arg4[%c0_8, %c0_9] : memref<64x256xbf16, #tpu.memory_space<vmem>>, vector<64x256xbf16>
    %cst_10 = arith.constant dense<0.000000e+00> : vector<128x256xf32>
    %10 = tpu.matmul %3, %9, %cst_10 {dimension_numbers = #tpu.dot_dimension_numbers<[1], [0], [0], [1], [0, 0, 1, 1], [], []>} : vector<128x64xbf16>, vector<64x256xbf16>, vector<128x256xf32> -> vector<128x256xf32>
    %c0_11 = arith.constant 0 : index
    %c0_12 = arith.constant 0 : index
    %11 = vector.load %arg5[%c0_11, %c0_12] : memref<1x256xf32, #tpu.memory_space<vmem>>, vector<1x256xf32>
    %12 = vector.broadcast %11 : vector<1x256xf32> to vector<128x256xf32>
    %13 = arith.addf %10, %12 : vector<128x256xf32>
    %14 = vector.extract_strided_slice %13 {offsets = [0, 0], sizes = [128, 128], strides = [1, 1]} : vector<128x256xf32> to vector<128x128xf32>
    %15 = vector.shape_cast %14 : vector<128x128xf32> to vector<8x16x128xf32>
    %16 = vector.extract_strided_slice %13 {offsets = [0, 128], sizes = [128, 128], strides = [1, 1]} : vector<128x256xf32> to vector<128x128xf32>
    %17 = vector.shape_cast %16 : vector<128x128xf32> to vector<8x16x128xf32>
    %18 = vector.shape_cast %8 : vector<16x128xf32> to vector<1x16x128xf32>
    %19 = vector.broadcast %18 : vector<1x16x128xf32> to vector<8x16x128xf32>
    %20 = arith.mulf %19, %15 : vector<8x16x128xf32>
    %21 = arith.truncf %20 : vector<8x16x128xf32> to vector<8x16x128xbf16>
    %22 = vector.shape_cast %21 : vector<8x16x128xbf16> to vector<128x128xbf16>
    %23 = vector.extract_strided_slice %22 {offsets = [0, 0], sizes = [64, 128], strides = [1, 1]} : vector<128x128xbf16> to vector<64x128xbf16>
    %24 = vector.extract_strided_slice %22 {offsets = [64, 0], sizes = [64, 128], strides = [1, 1]} : vector<128x128xbf16> to vector<64x128xbf16>
    %25 = tpu.concatenate %23, %24 in 1 : vector<64x128xbf16>, vector<64x128xbf16> -> vector<64x256xbf16>
    %c0_13 = arith.constant 0 : index
    %c0_14 = arith.constant 0 : index
    %26 = vector.load %arg6[%c0_13, %c0_14] : memref<256x256xbf16, #tpu.memory_space<vmem>>, vector<256x256xbf16>
    %cst_15 = arith.constant dense<0.000000e+00> : vector<64x256xf32>
    %27 = tpu.matmul %25, %26, %cst_15 {dimension_numbers = #tpu.dot_dimension_numbers<[1], [0], [0], [1], [0, 0, 1, 1], [], []>} : vector<64x256xbf16>, vector<256x256xbf16>, vector<64x256xf32> -> vector<64x256xf32>
    %28 = vector.extract_strided_slice %27 {offsets = [0, 0], sizes = [64, 128], strides = [1, 1]} : vector<64x256xf32> to vector<64x128xf32>
    %29 = vector.extract_strided_slice %27 {offsets = [0, 128], sizes = [64, 128], strides = [1, 1]} : vector<64x256xf32> to vector<64x128xf32>
    %30 = tpu.concatenate %28, %29 in 0 : vector<64x128xf32>, vector<64x128xf32> -> vector<128x128xf32>
    %31 = vector.shape_cast %30 : vector<128x128xf32> to vector<8x16x128xf32>
    %cst_16 = arith.constant dense<0xFF800000> : vector<16x128xf32>
    %32 = vector.multi_reduction <maximumf>, %31, %cst_16 [0] : vector<8x16x128xf32> to vector<16x128xf32>
    %33 = vector.shape_cast %32 : vector<16x128xf32> to vector<1x16x128xf32>
    %34 = vector.broadcast %33 : vector<1x16x128xf32> to vector<8x16x128xf32>
    %35 = arith.subf %31, %34 : vector<8x16x128xf32>
    %36 = math.exp %35 : vector<8x16x128xf32>
    %cst_17 = arith.constant dense<0.000000e+00> : vector<16x128xf32>
    %37 = vector.multi_reduction <add>, %36, %cst_17 [0] : vector<8x16x128xf32> to vector<16x128xf32>
    %38 = arith.mulf %36, %17 : vector<8x16x128xf32>
    %cst_18 = arith.constant dense<0.000000e+00> : vector<16x128xf32>
    %39 = vector.multi_reduction <add>, %38, %cst_18 [0] : vector<8x16x128xf32> to vector<16x128xf32>
    %40 = tpu.reciprocal %37 {approx = true} : vector<16x128xf32> -> vector<16x128xf32>
    %41 = arith.mulf %39, %40 : vector<16x128xf32>
    %42 = arith.truncf %41 : vector<16x128xf32> to vector<16x128xbf16>
    %c0_19 = arith.constant 0 : index
    %c0_20 = arith.constant 0 : index
    %43 = vector.load %arg7[%c0_19, %c0_20] : memref<128x128xbf16, #tpu.memory_space<vmem>>, vector<128x128xbf16>
    %cst_21 = arith.constant dense<0.000000e+00> : vector<16x128xf32>
    %44 = tpu.matmul %42, %43, %cst_21 {dimension_numbers = #tpu.dot_dimension_numbers<[1], [0], [0], [1], [0, 0, 1, 1], [], []>} : vector<16x128xbf16>, vector<128x128xbf16>, vector<16x128xf32> -> vector<16x128xf32>
    %c0_22 = arith.constant 0 : index
    %c0_23 = arith.constant 0 : index
    %45 = vector.load %arg8[%c0_22, %c0_23] : memref<1x128xf32, #tpu.memory_space<vmem>>, vector<1x128xf32>
    %46 = vector.broadcast %45 : vector<1x128xf32> to vector<16x128xf32>
    %47 = arith.addf %44, %46 : vector<16x128xf32>
    %cst_24 = arith.constant 0.000000e+00 : f32
    %48 = vector.broadcast %cst_24 : f32 to vector<16x128xf32>
    %49 = arith.maximumf %47, %48 : vector<16x128xf32>
    %50 = arith.truncf %49 : vector<16x128xf32> to vector<16x128xbf16>
    %c0_25 = arith.constant 0 : index
    %c0_26 = arith.constant 0 : index
    %51 = vector.load %arg9[%c0_25, %c0_26] : memref<128x64xbf16, #tpu.memory_space<vmem>>, vector<128x64xbf16>
    %cst_27 = arith.constant dense<0.000000e+00> : vector<16x64xf32>
    %52 = tpu.matmul %50, %51, %cst_27 {dimension_numbers = #tpu.dot_dimension_numbers<[1], [0], [0], [1], [0, 0, 1, 1], [], []>} : vector<16x128xbf16>, vector<128x64xbf16>, vector<16x64xf32> -> vector<16x64xf32>
    %c0_28 = arith.constant 0 : index
    %c0_29 = arith.constant 0 : index
    %53 = vector.load %arg10[%c0_28, %c0_29] : memref<1x64xf32, #tpu.memory_space<vmem>>, vector<1x64xf32>
    %54 = vector.broadcast %53 : vector<1x64xf32> to vector<16x64xf32>
    %55 = arith.addf %52, %54 : vector<16x64xf32>
    %56 = vector.extract_strided_slice %55 {offsets = [0, 0], sizes = [8, 64], strides = [1, 1]} : vector<16x64xf32> to vector<8x64xf32>
    %57 = vector.extract_strided_slice %55 {offsets = [8, 0], sizes = [8, 64], strides = [1, 1]} : vector<16x64xf32> to vector<8x64xf32>
    %58 = tpu.concatenate %56, %57 in 1 : vector<8x64xf32>, vector<8x64xf32> -> vector<8x128xf32>
    %c0_30 = arith.constant 0 : index
    %c0_31 = arith.constant 0 : index
    %59 = vector.load %arg11[%c0_30, %c0_31] : memref<8x128xf32, #tpu.memory_space<vmem>>, vector<8x128xf32>
    tpu.vector_store %arg11[%c0_30, %c0_31], %58 {strides = array<i32>} : memref<8x128xf32, #tpu.memory_space<vmem>>, vector<8x128xf32>,
    return
  }
  func.func @transform_0(%arg0: i32) -> (i32, i32, i32) {
    %c0_i32 = arith.constant 0 : i32
    %c0_i32_0 = arith.constant 0 : i32
    %c0_i32_1 = arith.constant 0 : i32
    return %c0_i32, %arg0, %c0_i32_0 : i32, i32, i32
  }
  func.func @transform_1(%arg0: i32) -> (i32, i32) {
    %c0_i32 = arith.constant 0 : i32
    %c0_i32_0 = arith.constant 0 : i32
    %c0_i32_1 = arith.constant 0 : i32
    return %c0_i32, %c0_i32_0 : i32, i32
  }
  func.func @transform_2(%arg0: i32) -> (i32, i32) {
    %c0_i32 = arith.constant 0 : i32
    %c0_i32_0 = arith.constant 0 : i32
    %c0_i32_1 = arith.constant 0 : i32
    return %c0_i32, %c0_i32_0 : i32, i32
  }
  func.func @transform_3(%arg0: i32) -> (i32, i32) {
    %c0_i32 = arith.constant 0 : i32
    %c0_i32_0 = arith.constant 0 : i32
    %c0_i32_1 = arith.constant 0 : i32
    return %c0_i32, %c0_i32_0 : i32, i32
  }
  func.func @transform_4(%arg0: i32) -> (i32, i32) {
    %c0_i32 = arith.constant 0 : i32
    %c0_i32_0 = arith.constant 0 : i32
    %c0_i32_1 = arith.constant 0 : i32
    return %c0_i32, %c0_i32_0 : i32, i32
  }
  func.func @transform_5(%arg0: i32) -> (i32, i32) {
    %c0_i32 = arith.constant 0 : i32
    %c0_i32_0 = arith.constant 0 : i32
    %c0_i32_1 = arith.constant 0 : i32
    return %c0_i32, %c0_i32_0 : i32, i32
  }
  func.func @transform_6(%arg0: i32) -> (i32, i32) {
    %c0_i32 = arith.constant 0 : i32
    %c0_i32_0 = arith.constant 0 : i32
    %c0_i32_1 = arith.constant 0 : i32
    return %c0_i32, %c0_i32_0 : i32, i32
  }
  func.func @transform_7(%arg0: i32) -> (i32, i32) {
    %c0_i32 = arith.constant 0 : i32
    %c0_i32_0 = arith.constant 0 : i32
    %c0_i32_1 = arith.constant 0 : i32
    return %c0_i32, %c0_i32_0 : i32, i32
  }
  func.func @transform_8(%arg0: i32) -> (i32, i32) {
    %c0_i32 = arith.constant 0 : i32
    %c0_i32_0 = arith.constant 0 : i32
    %c0_i32_1 = arith.constant 0 : i32
    return %c0_i32, %c0_i32_0 : i32, i32
  }
  func.func @transform_9(%arg0: i32) -> (i32, i32) {
    %c0_i32 = arith.constant 0 : i32
    %c0_i32_0 = arith.constant 0 : i32
    %c0_i32_1 = arith.constant 0 : i32
    return %c0_i32, %c0_i32_0 : i32, i32
  }
  func.func @transform_10(%arg0: i32) -> (i32, i32) {
    %c0_i32 = arith.constant 0 : i32
    %c0_i32_0 = arith.constant 0 : i32
    return %arg0, %c0_i32 : i32, i32
  }
}

</mosaic_0001>

<llo_original>
// kernel: tpu_custom_call.1
$region0: #{tpu_custom_call.1}
  #allocation0 [shape = 'u32[]', space=smem, size = 0x4, offset = 0x4, fixed_abs, tag = 'smem constant byte address 0x4 - core index']
  #allocation1 [shape = 'u32[144,128]{1,0:T(1,128)}', space=vmem, size = 0x12000, scoped, tag = 'internal scratch']
  #allocation9 [shape = 's32[]', space=sflag, size = 0x4, offset = 0, fixed_abs, tag = 'sflag constant byte address 0x0 - dummy sync flag']
  %s0 = inlined_call_operand.hbm [shape: bf16[8,32,64], index: 0, kind: input, shape index: {}]
  %s1 = inlined_call_operand.vmem [shape: bf16[64,128], index: 1, kind: input, shape index: {}]
  %s2 = inlined_call_operand.vmem [shape: f32[1,128], index: 2, kind: input, shape index: {}]
  %s3 = inlined_call_operand.vmem [shape: bf16[64,256], index: 3, kind: input, shape index: {}]
  %s4 = inlined_call_operand.vmem [shape: f32[1,256], index: 4, kind: input, shape index: {}]
  %s5 = inlined_call_operand.hbm [shape: bf16[256,256], index: 5, kind: input, shape index: {}]
  %s6 = inlined_call_operand.hbm [shape: bf16[128,128], index: 6, kind: input, shape index: {}]
  %s7 = inlined_call_operand.vmem [shape: f32[1,128], index: 7, kind: input, shape index: {}]
  %s8 = inlined_call_operand.vmem [shape: bf16[128,64], index: 8, kind: input, shape index: {}]
  %s9 = inlined_call_operand.vmem [shape: f32[1,64], index: 9, kind: input, shape index: {}]
  %s10 = inlined_call_operand.hbm [shape: f32[16,128], index: 10, kind: output, shape index: {}]
  %s11 = sld [smem:[#allocation0]]
  $region85: #{tpu_custom_call.1} parent=0
    _
  %s13 = ssub.s32 1, %s11
  %s14 = scalar_select 0, %s13, %s11
  $region1: #{tpu_custom_call.1} parent=0
    #allocation2 [shape = 'u8[65536]{0}', space=vmem, size = 0x10000, scoped, tag = 'input window, operand 0']
    #allocation3 [shape = 's32[2]{0}', space=sflag, size = 0x8, scoped, tag = 'scoped memory for tpu_custom_call.1']
    #allocation4 [shape = 's32[2]{0}', space=sflag, size = 0x8, scoped, tag = 'scoped memory for tpu_custom_call.1']
    #allocation5 [shape = 'u8[131072]{0}', space=vmem, size = 0x20000, scoped, tag = 'input window, operand 5, single buffered']
    #allocation6 [shape = 's32[1]{0}', space=sflag, size = 0x4, scoped, tag = 'scoped memory for tpu_custom_call.1']
    #allocation7 [shape = 'u8[32768]{0}', space=vmem, size = 0x8000, scoped, tag = 'input window, operand 6, single buffered']
    #allocation8 [shape = 'u8[8192]{0}', space=vmem, size = 0x2000, scoped, tag = 'output window, operand 0']
    %15 = vsyncpa [#allocation3], 0
    %s16 = scalar_lea.sflag [#allocation3], 1
    %17 = vsyncpa %s16, 0
    %18 = vsyncpa [#allocation6], 0
    %19 = vsyncpa [#allocation4], 0
    %s20 = scalar_lea.sflag [#allocation4], 1
    %21 = vsyncpa %s20, 0
    loop: start=0, step=1, limit=4
    $region2: #{tpu_custom_call.1} parent=1 // loop_pre_header
      _
    $region3: #{tpu_custom_call.1} parent=1 // loop_header
      %s23 = sphi 0, %s27
      %p24 = scmp.ge.s32.totalorder %s23, 4
      %s33 = sphi 0, %s35
      %s36 = sphi 0, %s33
      %s37 = sphi 0, %s36
      %s53 = sphi 0, %s37
      %s57 = sphi 0, %s57
      %s59 = sphi 0, %s57
      %s60 = sphi 0, %s59
      %s74 = sphi 0, %s60
      %s78 = sphi 0, %s78
      %s80 = sphi 0, %s78
      %s81 = sphi 0, %s80
      %s95 = sphi 0, %s81
      %s99 = sphi 0, %s99
      %s101 = sphi 0, %s99
      %s102 = sphi 0, %s101
      %s116 = sphi 0, %s102
      %s120 = sphi 0, %s120
      %s122 = sphi 0, %s120
      %s123 = sphi 0, %s122
      %s137 = sphi 0, %s123
      %s141 = sphi 0, %s141
      %s143 = sphi 0, %s141
      %s144 = sphi 0, %s143
      %s158 = sphi 0, %s144
      %s162 = sphi 0, %s162
      %s164 = sphi 0, %s162
      %s165 = sphi 0, %s164
      %s179 = sphi 0, %s165
      %s183 = sphi 0, %s183
      %s185 = sphi 0, %s183
      %s186 = sphi 0, %s185
      %s200 = sphi 0, %s186
      %s204 = sphi 0, %s204
      %s206 = sphi 0, %s204
      %s207 = sphi 0, %s206
      %s221 = sphi 0, %s207
      %s225 = sphi 0, %s225
      %s227 = sphi 0, %s225
      %s228 = sphi 0, %s227
      %s242 = sphi 0, %s228
      %s248 = sphi 0, %s250
      %s251 = sphi 0, %s248
      %s252 = sphi 0, %s251
      %s268 = sphi 0, %s252
    $region4: #{tpu_custom_call.1} parent=1 // loop_header_branch
      %26 = sbr.rel (%p24) target = $region8
    $region5: #{tpu_custom_call.1} parent=1 // loop_body
      %s28 = ssub.s32 %s23, 1
      %s29 = ssub.s32 %s23, 2
      %s30 = sadd.s32 %s23, 1
      %s31 = ssub.s32 %s23, %s30
      %p32 = scmp.eq.s32.totalorder %s31, 0
      %s34 = sadd.s32 %s33, 1
      %s35 = scalar_select %p32, %s33, %s34
      %p38 = pneg %p32
      %p39 = scmp.eq.s32.totalorder %s23, 1
      %p40 = por %p38, %p39
      %p41 = scmp.ne.s32.totalorder %s33, %s36
      %p42 = scmp.eq.s32.totalorder %s23, 0
      %p43 = por %p41, %p42
      %p44 = scmp.ne.s32.totalorder %s33, %s36
      %p45 = scmp.eq.s32.totalorder %s28, 1
      %p46 = por %p44, %p45
      %p47 = scmp.ne.s32.totalorder %s36, %s37
      %p48 = scmp.eq.s32.totalorder %s28, 0
      %p49 = por %p47, %p48
      %p50 = scmp.ne.s32.totalorder %s36, %s37
      %p51 = scmp.eq.s32.totalorder %s29, 1
      %p52 = por %p50, %p51
      %p54 = scmp.ne.s32.totalorder %s37, %s53
      %p55 = scmp.eq.s32.totalorder %s29, 0
      %p56 = por %p54, %p55
      %s58 = sadd.s32 %s57, 1
      %p61 = scmp.eq.s32.totalorder %s23, 1
      %p62 = scmp.ne.s32.totalorder %s57, %s59
      %p63 = scmp.eq.s32.totalorder %s23, 0
      %p64 = por %p62, %p63
      %p65 = scmp.ne.s32.totalorder %s57, %s59
      %p66 = scmp.eq.s32.totalorder %s28, 1
      %p67 = por %p65, %p66
      %p68 = scmp.ne.s32.totalorder %s59, %s60
      %p69 = scmp.eq.s32.totalorder %s28, 0
      %p70 = por %p68, %p69
      %p71 = scmp.ne.s32.totalorder %s59, %s60
      %p72 = scmp.eq.s32.totalorder %s29, 1
      %p73 = por %p71, %p72
      %p75 = scmp.ne.s32.totalorder %s60, %s74
      %p76 = scmp.eq.s32.totalorder %s29, 0
      %p77 = por %p75, %p76
      %s79 = sadd.s32 %s78, 1
      %p82 = scmp.eq.s32.totalorder %s23, 1
      %p83 = scmp.ne.s32.totalorder %s78, %s80
      %p84 = scmp.eq.s32.totalorder %s23, 0
      %p85 = por %p83, %p84
      %p86 = scmp.ne.s32.totalorder %s78, %s80
      %p87 = scmp.eq.s32.totalorder %s28, 1
      %p88 = por %p86, %p87
      %p89 = scmp.ne.s32.totalorder %s80, %s81
      %p90 = scmp.eq.s32.totalorder %s28, 0
      %p91 = por %p89, %p90
      %p92 = scmp.ne.s32.totalorder %s80, %s81
      %p93 = scmp.eq.s32.totalorder %s29, 1
      %p94 = por %p92, %p93
      %p96 = scmp.ne.s32.totalorder %s81, %s95
      %p97 = scmp.eq.s32.totalorder %s29, 0
      %p98 = por %p96, %p97
      %s100 = sadd.s32 %s99, 1
      %p103 = scmp.eq.s32.totalorder %s23, 1
      %p104 = scmp.ne.s32.totalorder %s99, %s101
      %p105 = scmp.eq.s32.totalorder %s23, 0
      %p106 = por %p104, %p105
      %p107 = scmp.ne.s32.totalorder %s99, %s101
      %p108 = scmp.eq.s32.totalorder %s28, 1
      %p109 = por %p107, %p108
      %p110 = scmp.ne.s32.totalorder %s101, %s102
      %p111 = scmp.eq.s32.totalorder %s28, 0
      %p112 = por %p110, %p111
      %p113 = scmp.ne.s32.totalorder %s101, %s102
      %p114 = scmp.eq.s32.totalorder %s29, 1
      %p115 = por %p113, %p114
      %p117 = scmp.ne.s32.totalorder %s102, %s116
      %p118 = scmp.eq.s32.totalorder %s29, 0
      %p119 = por %p117, %p118
      %s121 = sadd.s32 %s120, 1
      %p124 = scmp.eq.s32.totalorder %s23, 1
      %p125 = scmp.ne.s32.totalorder %s120, %s122
      %p126 = scmp.eq.s32.totalorder %s23, 0
      %p127 = por %p125, %p126
      %p128 = scmp.ne.s32.totalorder %s120, %s122
      %p129 = scmp.eq.s32.totalorder %s28, 1
      %p130 = por %p128, %p129
      %p131 = scmp.ne.s32.totalorder %s122, %s123
      %p132 = scmp.eq.s32.totalorder %s28, 0
      %p133 = por %p131, %p132
      %p134 = scmp.ne.s32.totalorder %s122, %s123
      %p135 = scmp.eq.s32.totalorder %s29, 1
      %p136 = por %p134, %p135
      %p138 = scmp.ne.s32.totalorder %s123, %s137
      %p139 = scmp.eq.s32.totalorder %s29, 0
      %p140 = por %p138, %p139
      %s142 = sadd.s32 %s141, 1
      %p145 = scmp.eq.s32.totalorder %s23, 1
      %p146 = scmp.ne.s32.totalorder %s141, %s143
      %p147 = scmp.eq.s32.totalorder %s23, 0
      %p148 = por %p146, %p147
      %p149 = scmp.ne.s32.totalorder %s141, %s143
      %p150 = scmp.eq.s32.totalorder %s28, 1
      %p151 = por %p149, %p150
      %p152 = scmp.ne.s32.totalorder %s143, %s144
      %p153 = scmp.eq.s32.totalorder %s28, 0
      %p154 = por %p152, %p153
      %p155 = scmp.ne.s32.totalorder %s143, %s144
      %p156 = scmp.eq.s32.totalorder %s29, 1
      %p157 = por %p155, %p156
      %p159 = scmp.ne.s32.totalorder %s144, %s158
      %p160 = scmp.eq.s32.totalorder %s29, 0
      %p161 = por %p159, %p160
      %s163 = sadd.s32 %s162, 1
      %p166 = scmp.eq.s32.totalorder %s23, 1
      %p167 = scmp.ne.s32.totalorder %s162, %s164
      %p168 = scmp.eq.s32.totalorder %s23, 0
      %p169 = por %p167, %p168
      %p170 = scmp.ne.s32.totalorder %s162, %s164
      %p171 = scmp.eq.s32.totalorder %s28, 1
      %p172 = por %p170, %p171
      %p173 = scmp.ne.s32.totalorder %s164, %s165
      %p174 = scmp.eq.s32.totalorder %s28, 0
      %p175 = por %p173, %p174
      %p176 = scmp.ne.s32.totalorder %s164, %s165
      %p177 = scmp.eq.s32.totalorder %s29, 1
      %p178 = por %p176, %p177
      %p180 = scmp.ne.s32.totalorder %s165, %s179
      %p181 = scmp.eq.s32.totalorder %s29, 0
      %p182 = por %p180, %p181
      %s184 = sadd.s32 %s183, 1
      %p187 = scmp.eq.s32.totalorder %s23, 1
      %p188 = scmp.ne.s32.totalorder %s183, %s185
      %p189 = scmp.eq.s32.totalorder %s23, 0
      %p190 = por %p188, %p189
      %p191 = scmp.ne.s32.totalorder %s183, %s185
      %p192 = scmp.eq.s32.totalorder %s28, 1
      %p193 = por %p191, %p192
      %p194 = scmp.ne.s32.totalorder %s185, %s186
      %p195 = scmp.eq.s32.totalorder %s28, 0
      %p196 = por %p194, %p195
      %p197 = scmp.ne.s32.totalorder %s185, %s186
      %p198 = scmp.eq.s32.totalorder %s29, 1
      %p199 = por %p197, %p198
      %p201 = scmp.ne.s32.totalorder %s186, %s200
      %p202 = scmp.eq.s32.totalorder %s29, 0
      %p203 = por %p201, %p202
      %s205 = sadd.s32 %s204, 1
      %p208 = scmp.eq.s32.totalorder %s23, 1
      %p209 = scmp.ne.s32.totalorder %s204, %s206
      %p210 = scmp.eq.s32.totalorder %s23, 0
      %p211 = por %p209, %p210
      %p212 = scmp.ne.s32.totalorder %s204, %s206
      %p213 = scmp.eq.s32.totalorder %s28, 1
      %p214 = por %p212, %p213
      %p215 = scmp.ne.s32.totalorder %s206, %s207
      %p216 = scmp.eq.s32.totalorder %s28, 0
      %p217 = por %p215, %p216
      %p218 = scmp.ne.s32.totalorder %s206, %s207
      %p219 = scmp.eq.s32.totalorder %s29, 1
      %p220 = por %p218, %p219
      %p222 = scmp.ne.s32.totalorder %s207, %s221
      %p223 = scmp.eq.s32.totalorder %s29, 0
      %p224 = por %p222, %p223
      %s226 = sadd.s32 %s225, 1
      %p229 = scmp.eq.s32.totalorder %s23, 1
      %p230 = scmp.ne.s32.totalorder %s225, %s227
      %p231 = scmp.eq.s32.totalorder %s23, 0
      %p232 = por %p230, %p231
      %p233 = scmp.ne.s32.totalorder %s225, %s227
      %p234 = scmp.eq.s32.totalorder %s28, 1
      %p235 = por %p233, %p234
      %p236 = scmp.ne.s32.totalorder %s227, %s228
      %p237 = scmp.eq.s32.totalorder %s28, 0
      %p238 = por %p236, %p237
      %p239 = scmp.ne.s32.totalorder %s227, %s228
      %p240 = scmp.eq.s32.totalorder %s29, 1
      %p241 = por %p239, %p240
      %p243 = scmp.ne.s32.totalorder %s228, %s242
      %p244 = scmp.eq.s32.totalorder %s29, 0
      %p245 = por %p243, %p244
      %s246 = ssub.s32 %s23, %s30
      %p247 = scmp.eq.s32.totalorder %s246, 0
      %s249 = sadd.s32 %s248, 1
      %s250 = scalar_select %p247, %s248, %s249
      %p253 = pneg %p247
      %p254 = scmp.eq.s32.totalorder %s23, 1
      %p255 = por %p253, %p254
      %p256 = scmp.ne.s32.totalorder %s248, %s251
      %p257 = scmp.eq.s32.totalorder %s23, 0
      %p258 = por %p256, %p257
      %p259 = scmp.ne.s32.totalorder %s248, %s251
      %p260 = scmp.eq.s32.totalorder %s28, 1
      %p261 = por %p259, %p260
      %p262 = scmp.ne.s32.totalorder %s251, %s252
      %p263 = scmp.eq.s32.totalorder %s28, 0
      %p264 = por %p262, %p263
      %p265 = scmp.ne.s32.totalorder %s251, %s252
      %p266 = scmp.eq.s32.totalorder %s29, 1
      %p267 = por %p265, %p266
      %p269 = scmp.ne.s32.totalorder %s252, %s268
      %p270 = scmp.eq.s32.totalorder %s29, 0
      %p271 = por %p269, %p270
      %p272 = scmp.le.s32.totalorder 1, %s23
      %p273 = scmp.lt.s32.totalorder %s23, 3
      %p274 = pnand %p272, %p273
      %p275 = pneg %p274
      // Predicated region
      $region9: #{tpu_custom_call.1} parent=5 // pred_check
        _
      $region10: #{tpu_custom_call.1} parent=5 // pred_check_branch
        %277 = sbr.rel (%p274) target = $region12
      $region11: #{tpu_custom_call.1} parent=5 // pred_region
        %s278 = ssub.s32 %s23, 1
        // Predicated region
        $region13: #{tpu_custom_call.1} parent=11 // pred_check
          %p279 = pneg %p70
        $region14: #{tpu_custom_call.1} parent=11 // pred_check_branch
          %281 = sbr.rel (%p279) target = $region16
        $region15: #{tpu_custom_call.1} parent=11 // pred_region
          _
        $region16: #{tpu_custom_call.1} parent=11 // pred_fallthru
          _
        // Predicated region
        $region17: #{tpu_custom_call.1} parent=11 // pred_check
          %p282 = pneg %p91
        $region18: #{tpu_custom_call.1} parent=11 // pred_check_branch
          %284 = sbr.rel (%p282) target = $region20
        $region19: #{tpu_custom_call.1} parent=11 // pred_region
          _
        $region20: #{tpu_custom_call.1} parent=11 // pred_fallthru
          _
        // Predicated region
        $region21: #{tpu_custom_call.1} parent=11 // pred_check
          %p285 = pneg %p112
        $region22: #{tpu_custom_call.1} parent=11 // pred_check_branch
          %287 = sbr.rel (%p285) target = $region24
        $region23: #{tpu_custom_call.1} parent=11 // pred_region
          _
        $region24: #{tpu_custom_call.1} parent=11 // pred_fallthru
          _
        // Predicated region
        $region25: #{tpu_custom_call.1} parent=11 // pred_check
          %p288 = pneg %p133
        $region26: #{tpu_custom_call.1} parent=11 // pred_check_branch
          %290 = sbr.rel (%p288) target = $region28
        $region27: #{tpu_custom_call.1} parent=11 // pred_region
          _
        $region28: #{tpu_custom_call.1} parent=11 // pred_fallthru
          _
        // Predicated region
        $region29: #{tpu_custom_call.1} parent=11 // pred_check
          %p291 = pneg %p154
        $region30: #{tpu_custom_call.1} parent=11 // pred_check_branch
          %293 = sbr.rel (%p291) target = $region32
        $region31: #{tpu_custom_call.1} parent=11 // pred_region
          %s295 = ssub.s32 4096, 4096
          %296 = vsyncadd [#allocation6], %s295
          %s297 = sshll.u32 [#allocation5], 4
          %s298 = int_to_ptr.vmem [resolvable:$true] %s297
          %303 = dma.hbm_to_vmem [thread:$0]  %s5, 4096, %s298, [#allocation6], 128, 128, 8
        $region32: #{tpu_custom_call.1} parent=11 // pred_fallthru
          _
        // Predicated region
        $region33: #{tpu_custom_call.1} parent=11 // pred_check
          %p304 = pneg %p175
        $region34: #{tpu_custom_call.1} parent=11 // pred_check_branch
          %306 = sbr.rel (%p304) target = $region36
        $region35: #{tpu_custom_call.1} parent=11 // pred_region
          %s308 = ssub.s32 1024, 1024
          %309 = vsyncadd [#allocation6], %s308
          %s310 = sshll.u32 [#allocation7], 4
          %s311 = int_to_ptr.vmem [resolvable:$true] %s310
          %316 = dma.hbm_to_vmem [thread:$0]  %s6, 1024, %s311, [#allocation6], 64, 64, 4
        $region36: #{tpu_custom_call.1} parent=11 // pred_fallthru
          _
        // Predicated region
        $region37: #{tpu_custom_call.1} parent=11 // pred_check
          %p317 = pneg %p196
        $region38: #{tpu_custom_call.1} parent=11 // pred_check_branch
          %319 = sbr.rel (%p317) target = $region40
        $region39: #{tpu_custom_call.1} parent=11 // pred_region
          _
        $region40: #{tpu_custom_call.1} parent=11 // pred_fallthru
          _
        // Predicated region
        $region41: #{tpu_custom_call.1} parent=11 // pred_check
          %p320 = pneg %p217
        $region42: #{tpu_custom_call.1} parent=11 // pred_check_branch
          %322 = sbr.rel (%p320) target = $region44
        $region43: #{tpu_custom_call.1} parent=11 // pred_region
          _
        $region44: #{tpu_custom_call.1} parent=11 // pred_fallthru
          _
        // Predicated region
        $region45: #{tpu_custom_call.1} parent=11 // pred_check
          %p323 = pneg %p238
        $region46: #{tpu_custom_call.1} parent=11 // pred_check_branch
          %325 = sbr.rel (%p323) target = $region48
        $region47: #{tpu_custom_call.1} parent=11 // pred_region
          _
        $region48: #{tpu_custom_call.1} parent=11 // pred_fallthru
          _
      $region12: #{tpu_custom_call.1} parent=5 // pred_fallthru
        _
      %p326 = scmp.lt.s32.totalorder %s23, 2
      // Predicated region
      $region49: #{tpu_custom_call.1} parent=5 // pred_check
        %p327 = pneg %p326
      $region50: #{tpu_custom_call.1} parent=5 // pred_check_branch
        %329 = sbr.rel (%p327) target = $region52
      $region51: #{tpu_custom_call.1} parent=5 // pred_region
        // Predicated region
        $region53: #{tpu_custom_call.1} parent=51 // pred_check
          %p330 = pneg %p43
        $region54: #{tpu_custom_call.1} parent=51 // pred_check_branch
          %332 = sbr.rel (%p330) target = $region56
        $region55: #{tpu_custom_call.1} parent=51 // pred_region
          #allocation10 [shape = 'u32[6]{0}', space=smem, size = 0x18, scoped, tag = 'DMA stride descriptor']
          %s333 = sand.u32 %s33, 1
          %s334 = scalar_lea.sflag [#allocation3], %s333
          %s335 = sand.u32 %s33, 1
          %s336 = smul.addr %s335, 64
          %s337 = scalar_lea.vmem [#allocation2], %s336
          %s338 = smul.u32 2, %s23
          %s340 = ssub.s32 1024, 1024
          %341 = vsyncadd %s334, %s340
          %s342 = smul.addr %s338, 64
          %s343 = scalar_lea.hbm %s0, %s342
          %s345 = sshll.u32 1, 14
          %s346 = sxor.u32 4294967295, %s345
          %s348 = sld [smem:[#allocation0]]
          %s349 = sadd.s32 2, %s348
          %s351 = sshll.u32 7, 26
          %s352 = sxor.u32 4294967295, %s351
          %s353 = sand.u32 0, %s352
          %s354 = sshll.u32 %s349, 26
          %s355 = sor.u32 %s353, %s354
          %s356 = sshll.u32 %s337, 4
          %s357 = int_to_ptr.vmem [resolvable:$true] %s356
          %363 = sst [smem:[#allocation10]] 256
          %s364 = scalar_lea.smem [#allocation10], 1
          %365 = sst [smem:[%s364]] 128
          %s366 = scalar_lea.smem [#allocation10], 2
          %367 = sst [smem:[%s366]] 2
          %s368 = scalar_lea.smem [#allocation10], 3
          %369 = sst [smem:[%s368]] 64
          %s370 = scalar_lea.smem [#allocation10], 4
          %371 = sst [smem:[%s370]] 64
          %s372 = scalar_lea.smem [#allocation10], 5
          %373 = sst [smem:[%s372]] 4
          %375 = dma.general %s343, 1024, %s357, %s334, [#allocation9], [#allocation10], %s355, 0
        $region56: #{tpu_custom_call.1} parent=51 // pred_fallthru
          _
      $region52: #{tpu_custom_call.1} parent=5 // pred_fallthru
        _
      %p376 = scmp.le.s32.totalorder 1, %s23
      %p377 = scmp.lt.s32.totalorder %s23, 3
      %p378 = pnand %p376, %p377
      %p379 = pneg %p378
      // Predicated region
      $region57: #{tpu_custom_call.1} parent=5 // pred_check
        _
      $region58: #{tpu_custom_call.1} parent=5 // pred_check_branch
        %381 = sbr.rel (%p378) target = $region60
      $region59: #{tpu_custom_call.1} parent=5 // pred_region
        %s382 = ssub.s32 %s23, 1
        %s383 = sand.u32 %s36, 1
        %s384 = scalar_lea.sflag [#allocation3], %s383
        %s385 = sand.u32 %s36, 1
        %s386 = smul.addr %s385, 64
        %s387 = scalar_lea.vmem [#allocation2], %s386
        // Predicated region
        $region61: #{tpu_custom_call.1} parent=59 // pred_check
          %p388 = pneg %p49
        $region62: #{tpu_custom_call.1} parent=59 // pred_check_branch
          %390 = sbr.rel (%p388) target = $region64
        $region63: #{tpu_custom_call.1} parent=59 // pred_region
          %391 = dma.done %s384, 1024
        $region64: #{tpu_custom_call.1} parent=59 // pred_fallthru
          _
        // Predicated region
        $region65: #{tpu_custom_call.1} parent=59 // pred_check
          %p392 = pneg %p154
        $region66: #{tpu_custom_call.1} parent=59 // pred_check_branch
          %394 = sbr.rel (%p392) target = $region68
        $region67: #{tpu_custom_call.1} parent=59 // pred_region
          %395 = dma.done [#allocation6], 4096
        $region68: #{tpu_custom_call.1} parent=59 // pred_fallthru
          _
        // Predicated region
        $region69: #{tpu_custom_call.1} parent=59 // pred_check
          %p396 = pneg %p175
        $region70: #{tpu_custom_call.1} parent=59 // pred_check_branch
          %398 = sbr.rel (%p396) target = $region72
        $region71: #{tpu_custom_call.1} parent=59 // pred_region
          %399 = dma.done [#allocation6], 1024
        $region72: #{tpu_custom_call.1} parent=59 // pred_fallthru
          _
        %s400 = sand.u32 %s36, 1
        %s401 = scalar_lea.sflag [#allocation3], %s400
        %s402 = sand.u32 %s36, 1
        %s403 = smul.addr %s402, 64
        %s404 = scalar_lea.vmem [#allocation2], %s403
        %p405 = pneg %p49
        %p406 = pneg %p46
        %p407 = pneg %p70
        %p408 = pneg %p67
        %p409 = pneg %p91
        %p410 = pneg %p88
        %p411 = pneg %p112
        %p412 = pneg %p109
        %p413 = pneg %p133
        %p414 = pneg %p130
        %p415 = pneg %p154
        %p416 = pneg %p151
        %p417 = pneg %p175
        %p418 = pneg %p172
        %p419 = pneg %p196
        %p420 = pneg %p193
        %p421 = pneg %p217
        %p422 = pneg %p214
        %p423 = pneg %p238
        %p424 = pneg %p235
        %p425 = pneg %p264
        %p426 = pneg %p261
        %s427 = sand.u32 %s251, 1
        %s428 = scalar_lea.sflag [#allocation4], %s427
        %s429 = sand.u32 %s251, 1
        %s430 = smul.addr %s429, 8
        %s431 = scalar_lea.vmem [#allocation8], %s430
        %s432 = smul.u32 2, %s28
        %s434 = scalar_lea.vmem %s387, 32 [#allocation2]
        %v435 = vld [vmem:[%s434] sm:$0xf]
        %v436 = vld [vmem:[%s434 + $0x4] sm:$0xf]
        %v437 = vld [vmem:[%s387] sm:$0xf]
        %v438 = vld [vmem:[%s387 + $0x4] sm:$0xf]
        %v439 = vld [vmem:[%s387 + $0x8] sm:$0xf]
        %v440 = vld [vmem:[%s387 + $0xc] sm:$0xf]
        %v441 = vld [vmem:[%s387 + $0x10] sm:$0xf]
        %v442 = vld [vmem:[%s387 + $0x14] sm:$0xf]
        %v443 = vld [vmem:[%s387 + $0x18] sm:$0xf]
        %v444 = vld [vmem:[%s387 + $0x1c] sm:$0xf]
        %v445 = vld [vmem:[%s387 + $0x20] sm:$0xf]
        %v446 = vld [vmem:[%s387 + $0x24] sm:$0xf]
        %v447 = vld [vmem:[%s387 + $0x28] sm:$0xf]
        %v448 = vld [vmem:[%s387 + $0x2c] sm:$0xf]
        %v449 = vld [vmem:[%s387 + $0x30] sm:$0xf]
        %v450 = vld [vmem:[%s387 + $0x34] sm:$0xf]
        %v451 = vld [vmem:[%s387 + $0x38] sm:$0xf]
        %v452 = vld [vmem:[%s387 + $0x3c] sm:$0xf]
        %v453 = vld [vmem:[%s1] sm:$0xf]
        %v454 = vld [vmem:[%s1 + $0x4] sm:$0xf]
        %v455 = vld [vmem:[%s1 + $0x8] sm:$0xf]
        %v456 = vld [vmem:[%s1 + $0xc] sm:$0xf]
        %v457 = vld [vmem:[%s1 + $0x10] sm:$0xf]
        %v458 = vld [vmem:[%s1 + $0x14] sm:$0xf]
        %v459 = vld [vmem:[%s1 + $0x18] sm:$0xf]
        %v460 = vld [vmem:[%s1 + $0x1c] sm:$0xf]
        %v461 = vld [vmem:[%s2] sm:$0x1]
        %v463 = vlaneseq
        %v464 = vshrl.u32 %v463, 7
        %v465 = vsub.s32 0, %v464
        %v466 = vrot.slane %v461, %v465
        %v470 = vunpack.c.l.b16 %v435
        %v471 = vunpack.c.l.b16 %v436
        %v472 = vpack.c.b16 %v471, %v470
        %v481 = vunpack.c.l.b16 %v453
        %v482 = vunpack.c.l.b16 %v454
        %v483 = vunpack.c.l.b16 %v455
        %v484 = vunpack.c.l.b16 %v456
        %v485 = vunpack.c.l.b16 %v457
        %v486 = vunpack.c.l.b16 %v458
        %v487 = vunpack.c.l.b16 %v459
        %v488 = vunpack.c.l.b16 %v460
        %v489 = vpack.c.b16 %v482, %v481
        %v490 = vpack.c.b16 %v484, %v483
        %v491 = vpack.c.b16 %v486, %v485
        %v492 = vpack.c.b16 %v488, %v487
        %vm497 = vcmask 523264
        %v499 = vsel %vm497, %v472, 0
        %501 = vmatprep.subr.bf16.mxu0 0
        %502 = vmatpush1.bf16.msra.mxu0 %v489
        %503 = vmatprep.subr.bf16.mxu0 0
        %504 = vmatpush1.bf16.msra.mxu0 %v490
        %505 = vmatprep.subr.bf16.mxu0 0
        %506 = vmatpush1.bf16.msra.mxu0 %v491
        %507 = vmatprep.subr.bf16.mxu0 0
        %508 = vmatpush1.bf16.msra.mxu0 %v492
        %509 = vmatprep.subr.bf16.mxu0 0
        %510 = vmatpush1.bf16.msra.mxu0 0
        %511 = vmatprep.subr.bf16.mxu0 0
        %512 = vmatpush1.bf16.msra.mxu0 0
        %513 = vmatprep.subr.bf16.mxu0 0
        %514 = vmatpush1.bf16.msra.mxu0 0
        %515 = vmatprep.subr.bf16.mxu0 0
        %516 = vmatpush1.bf16.msra.mxu0 0
        %517 = vmatprep.subr.bf16.mxu0 0
        %518 = vmatpush1.bf16.msra.mxu0 0
        %519 = vmatprep.subr.bf16.mxu0 0
        %520 = vmatpush1.bf16.msra.mxu0 0
        %521 = vmatprep.subr.bf16.mxu0 0
        %522 = vmatpush1.bf16.msra.mxu0 0
        %523 = vmatprep.subr.bf16.mxu0 0
        %524 = vmatpush1.bf16.msra.mxu0 0
        %525 = vmatprep.subr.bf16.mxu0 0
        %526 = vmatpush1.bf16.msra.mxu0 0
        %527 = vmatprep.subr.bf16.mxu0 0
        %528 = vmatpush1.bf16.msra.mxu0 0
        %529 = vmatprep.subr.bf16.mxu0 0
        %530 = vmatpush1.bf16.msra.mxu0 0
        %531 = vmatprep.subr.bf16.mxu0 0
        %532 = vmatpush1.bf16.msra.mxu0 0
        %533 = vmatprep.mubr.bf16.mxu0 0
        %534 = vmatmul.mubr.bf16.gmra.mrb[0].mxu0 %v499
        %v535 = vpop.f32.mrb[0].mxu0
        %v536 = vadd.f32 %v466, %v535
        %v537 = vpop.f32.mrb[0].mxu0
        %v538 = vpop.f32.mrb[0].mxu0
        %v539 = vadd.f32 %v466, %v538
        %v540 = vpop.f32.mrb[0].mxu0
        %541 = vdwg.mxu0
        %v542 = vld [vmem:[%s3] sm:$0xff]
        %v543 = vld [vmem:[%s3 + $0x8] sm:$0xff]
        %v544 = vld [vmem:[%s3 + $0x10] sm:$0xff]
        %v545 = vld [vmem:[%s3 + $0x18] sm:$0xff]
        %v546 = vld [vmem:[%s3 + $0x20] sm:$0xff]
        %v547 = vld [vmem:[%s3 + $0x28] sm:$0xff]
        %v548 = vld [vmem:[%s3 + $0x30] sm:$0xff]
        %v549 = vld [vmem:[%s3 + $0x38] sm:$0xff]
        %v550 = vld [vmem:[%s4] sm:$0x3]
        %v552 = vlaneseq
        %v553 = vshrl.u32 %v552, 7
        %v554 = vsub.s32 0, %v553
        %v555 = vrot.slane %v550, %v554
        %v556 = vlaneseq
        %v557 = vshrl.u32 %v556, 7
        %v558 = vsub.s32 1, %v557
        %v559 = vrot.slane %v550, %v558
        %v578 = vunpack.c.l.b16 %v437
        %v579 = vunpack.c.l.b16 %v438
        %v580 = vunpack.c.l.b16 %v439
        %v581 = vunpack.c.l.b16 %v440
        %v582 = vunpack.c.l.b16 %v441
        %v583 = vunpack.c.l.b16 %v442
        %v584 = vunpack.c.l.b16 %v443
        %v585 = vunpack.c.l.b16 %v444
        %v586 = vunpack.c.l.b16 %v445
        %v587 = vunpack.c.l.b16 %v446
        %v588 = vunpack.c.l.b16 %v447
        %v589 = vunpack.c.l.b16 %v448
        %v590 = vunpack.c.l.b16 %v449
        %v591 = vunpack.c.l.b16 %v450
        %v592 = vunpack.c.l.b16 %v451
        %v593 = vunpack.c.l.b16 %v452
        %v594 = vpack.c.b16 %v579, %v578
        %v595 = vpack.c.b16 %v581, %v580
        %v596 = vpack.c.b16 %v583, %v582
        %v597 = vpack.c.b16 %v585, %v584
        %v598 = vpack.c.b16 %v587, %v586
        %v599 = vpack.c.b16 %v589, %v588
        %v600 = vpack.c.b16 %v591, %v590
        %v601 = vpack.c.b16 %v593, %v592
        %v610 = vunpack.c.l.b16 %v542
        %v611 = vunpack.c.h.b16 %v542
        %v612 = vunpack.c.l.b16 %v543
        %v613 = vunpack.c.h.b16 %v543
        %v614 = vunpack.c.l.b16 %v544
        %v615 = vunpack.c.h.b16 %v544
        %v616 = vunpack.c.l.b16 %v545
        %v617 = vunpack.c.h.b16 %v545
        %v618 = vunpack.c.l.b16 %v546
        %v619 = vunpack.c.h.b16 %v546
        %v620 = vunpack.c.l.b16 %v547
        %v621 = vunpack.c.h.b16 %v547
        %v622 = vunpack.c.l.b16 %v548
        %v623 = vunpack.c.h.b16 %v548
        %v624 = vunpack.c.l.b16 %v549
        %v625 = vunpack.c.h.b16 %v549
        %v626 = vpack.c.b16 %v612, %v610
        %v627 = vpack.c.b16 %v613, %v611
        %v628 = vpack.c.b16 %v616, %v614
        %v629 = vpack.c.b16 %v617, %v615
        %v630 = vpack.c.b16 %v620, %v618
        %v631 = vpack.c.b16 %v621, %v619
        %v632 = vpack.c.b16 %v624, %v622
        %v633 = vpack.c.b16 %v625, %v623
        %v643 = vsel %vm497, %v594, 0
        %v646 = vsel %vm497, %v595, 0
        %v649 = vsel %vm497, %v596, 0
        %v652 = vsel %vm497, %v597, 0
        %v655 = vsel %vm497, %v598, 0
        %v658 = vsel %vm497, %v599, 0
        %v661 = vsel %vm497, %v600, 0
        %v664 = vsel %vm497, %v601, 0
        %666 = vmatprep.subr.bf16.mxu0 %v627
        %667 = vmatpush1.bf16.msra.mxu0 %v626
        %668 = vmatprep.subr.bf16.mxu0 %v629
        %669 = vmatpush1.bf16.msra.mxu0 %v628
        %670 = vmatprep.subr.bf16.mxu0 %v631
        %671 = vmatpush1.bf16.msra.mxu0 %v630
        %672 = vmatprep.subr.bf16.mxu0 %v633
        %673 = vmatpush1.bf16.msra.mxu0 %v632
        %674 = vmatprep.subr.bf16.mxu0 0
        %675 = vmatpush1.bf16.msra.mxu0 0
        %676 = vmatprep.subr.bf16.mxu0 0
        %677 = vmatpush1.bf16.msra.mxu0 0
        %678 = vmatprep.subr.bf16.mxu0 0
        %679 = vmatpush1.bf16.msra.mxu0 0
        %680 = vmatprep.subr.bf16.mxu0 0
        %681 = vmatpush1.bf16.msra.mxu0 0
        %682 = vmatprep.subr.bf16.mxu0 0
        %683 = vmatpush1.bf16.msra.mxu0 0
        %684 = vmatprep.subr.bf16.mxu0 0
        %685 = vmatpush1.bf16.msra.mxu0 0
        %686 = vmatprep.subr.bf16.mxu0 0
        %687 = vmatpush1.bf16.msra.mxu0 0
        %688 = vmatprep.subr.bf16.mxu0 0
        %689 = vmatpush1.bf16.msra.mxu0 0
        %690 = vmatprep.subr.bf16.mxu0 0
        %691 = vmatpush1.bf16.msra.mxu0 0
        %692 = vmatprep.subr.bf16.mxu0 0
        %693 = vmatpush1.bf16.msra.mxu0 0
        %694 = vmatprep.subr.bf16.mxu0 0
        %695 = vmatpush1.bf16.msra.mxu0 0
        %696 = vmatprep.subr.bf16.mxu0 0
        %697 = vmatpush1.bf16.msra.mxu0 0
        %698 = vmatprep.mubr.bf16.mxu0 0
        %699 = vmatmul.mubr.bf16.gmra.mrb[0].mxu0 %v643
        %v700 = vpop.f32.mrb[0].mxu0
        %v701 = vadd.f32 %v555, %v700
        %v702 = vpop.f32.mrb[0].mxu0
        %v703 = vadd.f32 %v559, %v702
        %v704 = vpop.f32.mrb[0].mxu0
        %v705 = vadd.f32 %v555, %v704
        %v706 = vpop.f32.mrb[0].mxu0
        %v707 = vadd.f32 %v559, %v706
        %708 = vmatprep.mubr.bf16.mxu0 0
        %709 = vmatmul.mubr.bf16.gmra.mrb[0].mxu0 %v646
        %v710 = vpop.f32.mrb[0].mxu0
        %v711 = vadd.f32 %v555, %v710
        %v712 = vpop.f32.mrb[0].mxu0
        %v713 = vadd.f32 %v559, %v712
        %v714 = vpop.f32.mrb[0].mxu0
        %v715 = vadd.f32 %v555, %v714
        %v716 = vpop.f32.mrb[0].mxu0
        %v717 = vadd.f32 %v559, %v716
        %718 = vmatprep.mubr.bf16.mxu0 0
        %719 = vmatmul.mubr.bf16.gmra.mrb[0].mxu0 %v649
        %v720 = vpop.f32.mrb[0].mxu0
        %v721 = vadd.f32 %v555, %v720
        %v722 = vpop.f32.mrb[0].mxu0
        %v723 = vadd.f32 %v559, %v722
        %v724 = vpop.f32.mrb[0].mxu0
        %v725 = vadd.f32 %v555, %v724
        %v726 = vpop.f32.mrb[0].mxu0
        %v727 = vadd.f32 %v559, %v726
        %728 = vmatprep.mubr.bf16.mxu0 0
        %729 = vmatmul.mubr.bf16.gmra.mrb[0].mxu0 %v652
        %v730 = vpop.f32.mrb[0].mxu0
        %v731 = vadd.f32 %v555, %v730
        %v732 = vpop.f32.mrb[0].mxu0
        %v733 = vadd.f32 %v559, %v732
        %v734 = vpop.f32.mrb[0].mxu0
        %v735 = vadd.f32 %v555, %v734
        %v736 = vpop.f32.mrb[0].mxu0
        %v737 = vadd.f32 %v559, %v736
        %738 = vmatprep.mubr.bf16.mxu0 0
        %739 = vmatmul.mubr.bf16.gmra.mrb[0].mxu0 %v655
        %v740 = vpop.f32.mrb[0].mxu0
        %v741 = vadd.f32 %v555, %v740
        %v742 = vpop.f32.mrb[0].mxu0
        %v743 = vadd.f32 %v559, %v742
        %v744 = vpop.f32.mrb[0].mxu0
        %v745 = vadd.f32 %v555, %v744
        %v746 = vpop.f32.mrb[0].mxu0
        %v747 = vadd.f32 %v559, %v746
        %748 = vmatprep.mubr.bf16.mxu0 0
        %749 = vmatmul.mubr.bf16.gmra.mrb[0].mxu0 %v658
        %v750 = vpop.f32.mrb[0].mxu0
        %v751 = vadd.f32 %v555, %v750
        %v752 = vpop.f32.mrb[0].mxu0
        %v753 = vadd.f32 %v559, %v752
        %v754 = vpop.f32.mrb[0].mxu0
        %v755 = vadd.f32 %v555, %v754
        %v756 = vpop.f32.mrb[0].mxu0
        %v757 = vadd.f32 %v559, %v756
        %758 = vmatprep.mubr.bf16.mxu0 0
        %759 = vmatmul.mubr.bf16.gmra.mrb[0].mxu0 %v661
        %v760 = vpop.f32.mrb[0].mxu0
        %v761 = vadd.f32 %v555, %v760
        %v762 = vpop.f32.mrb[0].mxu0
        %v763 = vadd.f32 %v559, %v762
        %v764 = vpop.f32.mrb[0].mxu0
        %v765 = vadd.f32 %v555, %v764
        %v766 = vpop.f32.mrb[0].mxu0
        %v767 = vadd.f32 %v559, %v766
        %768 = vmatprep.mubr.bf16.mxu0 0
        %769 = vmatmul.mubr.bf16.gmra.mrb[0].mxu0 %v664
        %v770 = vpop.f32.mrb[0].mxu0
        %v771 = vadd.f32 %v555, %v770
        %v772 = vpop.f32.mrb[0].mxu0
        %v773 = vadd.f32 %v559, %v772
        %v774 = vpop.f32.mrb[0].mxu0
        %v775 = vadd.f32 %v555, %v774
        %v776 = vpop.f32.mrb[0].mxu0
        %v777 = vadd.f32 %v559, %v776
        %778 = vdwg.mxu0
        %v779 = vmul.f32 %v536, %v701
        %v780 = vmul.f32 %v539, %v705
        %v781 = vmul.f32 %v536, %v711
        %v782 = vmul.f32 %v539, %v715
        %v783 = vmul.f32 %v536, %v721
        %v784 = vmul.f32 %v539, %v725
        %v785 = vmul.f32 %v536, %v731
        %v786 = vmul.f32 %v539, %v735
        %v787 = vmul.f32 %v536, %v741
        %v788 = vmul.f32 %v539, %v745
        %v789 = vmul.f32 %v536, %v751
        %v790 = vmul.f32 %v539, %v755
        %v791 = vmul.f32 %v536, %v761
        %v792 = vmul.f32 %v539, %v765
        %v793 = vmul.f32 %v536, %v771
        %v794 = vmul.f32 %v539, %v775
        %v795 = vpack.c.bf16 %v780, %v779
        %v796 = vpack.c.bf16 %v782, %v781
        %v797 = vpack.c.bf16 %v784, %v783
        %v798 = vpack.c.bf16 %v786, %v785
        %v799 = vpack.c.bf16 %v788, %v787
        %v800 = vpack.c.bf16 %v790, %v789
        %v801 = vpack.c.bf16 %v792, %v791
        %v802 = vpack.c.bf16 %v794, %v793
        %v803 = vld [vmem:[#allocation5] sm:$0xff]
        %v804 = vld [vmem:[#allocation5 + $0x8] sm:$0xff]
        %v805 = vld [vmem:[#allocation5 + $0x10] sm:$0xff]
        %v806 = vld [vmem:[#allocation5 + $0x18] sm:$0xff]
        %v807 = vld [vmem:[#allocation5 + $0x20] sm:$0xff]
        %v808 = vld [vmem:[#allocation5 + $0x28] sm:$0xff]
        %v809 = vld [vmem:[#allocation5 + $0x30] sm:$0xff]
        %v810 = vld [vmem:[#allocation5 + $0x38] sm:$0xff]
        %v811 = vld [vmem:[#allocation5 + $0x40] sm:$0xff]
        %v812 = vld [vmem:[#allocation5 + $0x48] sm:$0xff]
        %v813 = vld [vmem:[#allocation5 + $0x50] sm:$0xff]
        %v814 = vld [vmem:[#allocation5 + $0x58] sm:$0xff]
        %v815 = vld [vmem:[#allocation5 + $0x60] sm:$0xff]
        %v816 = vld [vmem:[#allocation5 + $0x68] sm:$0xff]
        %v817 = vld [vmem:[#allocation5 + $0x70] sm:$0xff]
        %v818 = vld [vmem:[#allocation5 + $0x78] sm:$0xff]
        %v819 = vld [vmem:[#allocation5 + $0x80] sm:$0xff]
        %v820 = vld [vmem:[#allocation5 + $0x88] sm:$0xff]
        %v821 = vld [vmem:[#allocation5 + $0x90] sm:$0xff]
        %v822 = vld [vmem:[#allocation5 + $0x98] sm:$0xff]
        %v823 = vld [vmem:[#allocation5 + $0xa0] sm:$0xff]
        %v824 = vld [vmem:[#allocation5 + $0xa8] sm:$0xff]
        %v825 = vld [vmem:[#allocation5 + $0xb0] sm:$0xff]
        %v826 = vld [vmem:[#allocation5 + $0xb8] sm:$0xff]
        %v827 = vld [vmem:[#allocation5 + $0xc0] sm:$0xff]
        %v828 = vld [vmem:[#allocation5 + $0xc8] sm:$0xff]
        %v829 = vld [vmem:[#allocation5 + $0xd0] sm:$0xff]
        %v830 = vld [vmem:[#allocation5 + $0xd8] sm:$0xff]
        %v831 = vld [vmem:[#allocation5 + $0xe0] sm:$0xff]
        %v832 = vld [vmem:[#allocation5 + $0xe8] sm:$0xff]
        %v833 = vld [vmem:[#allocation5 + $0xf0] sm:$0xff]
        %v834 = vld [vmem:[#allocation5 + $0xf8] sm:$0xff]
        %v867 = vunpack.c.l.b16 %v803
        %v868 = vunpack.c.h.b16 %v803
        %v869 = vunpack.c.l.b16 %v804
        %v870 = vunpack.c.h.b16 %v804
        %v871 = vunpack.c.l.b16 %v805
        %v872 = vunpack.c.h.b16 %v805
        %v873 = vunpack.c.l.b16 %v806
        %v874 = vunpack.c.h.b16 %v806
        %v875 = vunpack.c.l.b16 %v807
        %v876 = vunpack.c.h.b16 %v807
        %v877 = vunpack.c.l.b16 %v808
        %v878 = vunpack.c.h.b16 %v808
        %v879 = vunpack.c.l.b16 %v809
        %v880 = vunpack.c.h.b16 %v809
        %v881 = vunpack.c.l.b16 %v810
        %v882 = vunpack.c.h.b16 %v810
        %v883 = vunpack.c.l.b16 %v811
        %v884 = vunpack.c.h.b16 %v811
        %v885 = vunpack.c.l.b16 %v812
        %v886 = vunpack.c.h.b16 %v812
        %v887 = vunpack.c.l.b16 %v813
        %v888 = vunpack.c.h.b16 %v813
        %v889 = vunpack.c.l.b16 %v814
        %v890 = vunpack.c.h.b16 %v814
        %v891 = vunpack.c.l.b16 %v815
        %v892 = vunpack.c.h.b16 %v815
        %v893 = vunpack.c.l.b16 %v816
        %v894 = vunpack.c.h.b16 %v816
        %v895 = vunpack.c.l.b16 %v817
        %v896 = vunpack.c.h.b16 %v817
        %v897 = vunpack.c.l.b16 %v818
        %v898 = vunpack.c.h.b16 %v818
        %v899 = vunpack.c.l.b16 %v819
        %v900 = vunpack.c.h.b16 %v819
        %v901 = vunpack.c.l.b16 %v820
        %v902 = vunpack.c.h.b16 %v820
        %v903 = vunpack.c.l.b16 %v821
        %v904 = vunpack.c.h.b16 %v821
        %v905 = vunpack.c.l.b16 %v822
        %v906 = vunpack.c.h.b16 %v822
        %v907 = vunpack.c.l.b16 %v823
        %v908 = vunpack.c.h.b16 %v823
        %v909 = vunpack.c.l.b16 %v824
        %v910 = vunpack.c.h.b16 %v824
        %v911 = vunpack.c.l.b16 %v825
        %v912 = vunpack.c.h.b16 %v825
        %v913 = vunpack.c.l.b16 %v826
        %v914 = vunpack.c.h.b16 %v826
        %v915 = vunpack.c.l.b16 %v827
        %v916 = vunpack.c.h.b16 %v827
        %v917 = vunpack.c.l.b16 %v828
        %v918 = vunpack.c.h.b16 %v828
        %v919 = vunpack.c.l.b16 %v829
        %v920 = vunpack.c.h.b16 %v829
        %v921 = vunpack.c.l.b16 %v830
        %v922 = vunpack.c.h.b16 %v830
        %v923 = vunpack.c.l.b16 %v831
        %v924 = vunpack.c.h.b16 %v831
        %v925 = vunpack.c.l.b16 %v832
        %v926 = vunpack.c.h.b16 %v832
        %v927 = vunpack.c.l.b16 %v833
        %v928 = vunpack.c.h.b16 %v833
        %v929 = vunpack.c.l.b16 %v834
        %v930 = vunpack.c.h.b16 %v834
        %v931 = vpack.c.b16 %v869, %v867
        %v932 = vpack.c.b16 %v870, %v868
        %v933 = vpack.c.b16 %v873, %v871
        %v934 = vpack.c.b16 %v874, %v872
        %v935 = vpack.c.b16 %v877, %v875
        %v936 = vpack.c.b16 %v878, %v876
        %v937 = vpack.c.b16 %v881, %v879
        %v938 = vpack.c.b16 %v882, %v880
        %v939 = vpack.c.b16 %v885, %v883
        %v940 = vpack.c.b16 %v886, %v884
        %v941 = vpack.c.b16 %v889, %v887
        %v942 = vpack.c.b16 %v890, %v888
        %v943 = vpack.c.b16 %v893, %v891
        %v944 = vpack.c.b16 %v894, %v892
        %v945 = vpack.c.b16 %v897, %v895
        %v946 = vpack.c.b16 %v898, %v896
        %v947 = vpack.c.b16 %v901, %v899
        %v948 = vpack.c.b16 %v902, %v900
        %v949 = vpack.c.b16 %v905, %v903
        %v950 = vpack.c.b16 %v906, %v904
        %v951 = vpack.c.b16 %v909, %v907
        %v952 = vpack.c.b16 %v910, %v908
        %v953 = vpack.c.b16 %v913, %v911
        %v954 = vpack.c.b16 %v914, %v912
        %v955 = vpack.c.b16 %v917, %v915
        %v956 = vpack.c.b16 %v918, %v916
        %v957 = vpack.c.b16 %v921, %v919
        %v958 = vpack.c.b16 %v922, %v920
        %v959 = vpack.c.b16 %v925, %v923
        %v960 = vpack.c.b16 %v926, %v924
        %v961 = vpack.c.b16 %v929, %v927
        %v962 = vpack.c.b16 %v930, %v928
        %995 = vmatprep.subr.bf16.mxu0 %v932
        %996 = vmatpush1.bf16.msra.mxu0 %v931
        %997 = vmatprep.subr.bf16.mxu0 %v934
        %998 = vmatpush1.bf16.msra.mxu0 %v933
        %999 = vmatprep.subr.bf16.mxu0 %v936
        %1000 = vmatpush1.bf16.msra.mxu0 %v935
        %1001 = vmatprep.subr.bf16.mxu0 %v938
        %1002 = vmatpush1.bf16.msra.mxu0 %v937
        %1003 = vmatprep.subr.bf16.mxu0 %v940
        %1004 = vmatpush1.bf16.msra.mxu0 %v939
        %1005 = vmatprep.subr.bf16.mxu0 %v942
        %1006 = vmatpush1.bf16.msra.mxu0 %v941
        %1007 = vmatprep.subr.bf16.mxu0 %v944
        %1008 = vmatpush1.bf16.msra.mxu0 %v943
        %1009 = vmatprep.subr.bf16.mxu0 %v946
        %1010 = vmatpush1.bf16.msra.mxu0 %v945
        %1011 = vmatprep.subr.bf16.mxu0 %v948
        %1012 = vmatpush1.bf16.msra.mxu0 %v947
        %1013 = vmatprep.subr.bf16.mxu0 %v950
        %1014 = vmatpush1.bf16.msra.mxu0 %v949
        %1015 = vmatprep.subr.bf16.mxu0 %v952
        %1016 = vmatpush1.bf16.msra.mxu0 %v951
        %1017 = vmatprep.subr.bf16.mxu0 %v954
        %1018 = vmatpush1.bf16.msra.mxu0 %v953
        %1019 = vmatprep.subr.bf16.mxu0 %v956
        %1020 = vmatpush1.bf16.msra.mxu0 %v955
        %1021 = vmatprep.subr.bf16.mxu0 %v958
        %1022 = vmatpush1.bf16.msra.mxu0 %v957
        %1023 = vmatprep.subr.bf16.mxu0 %v960
        %1024 = vmatpush1.bf16.msra.mxu0 %v959
        %1025 = vmatprep.subr.bf16.mxu0 %v962
        %1026 = vmatpush1.bf16.msra.mxu0 %v961
        %1027 = vmatprep.mubr.bf16.mxu0 %v799
        %1028 = vmatmul.mubr.bf16.gmra.mrb[0].mxu0 %v795
        %v1029 = vpop.f32.mrb[0].mxu0
        %v1030 = vadd.f32 0.0, %v1029
        %v1031 = vpop.f32.mrb[0].mxu0
        %v1032 = vadd.f32 0.0, %v1031
        %v1033 = vpop.f32.mrb[0].mxu0
        %v1034 = vadd.f32 0.0, %v1033
        %v1035 = vpop.f32.mrb[0].mxu0
        %v1036 = vadd.f32 0.0, %v1035
        %1037 = vmatprep.mubr.bf16.mxu0 %v800
        %1038 = vmatmul.mubr.bf16.gmra.mrb[0].mxu0 %v796
        %v1039 = vpop.f32.mrb[0].mxu0
        %v1040 = vadd.f32 0.0, %v1039
        %v1041 = vpop.f32.mrb[0].mxu0
        %v1042 = vadd.f32 0.0, %v1041
        %v1043 = vpop.f32.mrb[0].mxu0
        %v1044 = vadd.f32 0.0, %v1043
        %v1045 = vpop.f32.mrb[0].mxu0
        %v1046 = vadd.f32 0.0, %v1045
        %1047 = vmatprep.mubr.bf16.mxu0 %v801
        %1048 = vmatmul.mubr.bf16.gmra.mrb[0].mxu0 %v797
        %v1049 = vpop.f32.mrb[0].mxu0
        %v1050 = vadd.f32 0.0, %v1049
        %v1051 = vpop.f32.mrb[0].mxu0
        %v1052 = vadd.f32 0.0, %v1051
        %v1053 = vpop.f32.mrb[0].mxu0
        %v1054 = vadd.f32 0.0, %v1053
        %v1055 = vpop.f32.mrb[0].mxu0
        %v1056 = vadd.f32 0.0, %v1055
        %1057 = vmatprep.mubr.bf16.mxu0 %v802
        %1058 = vmatmul.mubr.bf16.gmra.mrb[0].mxu0 %v798
        %v1059 = vpop.f32.mrb[0].mxu0
        %v1060 = vadd.f32 0.0, %v1059
        %v1061 = vpop.f32.mrb[0].mxu0
        %v1062 = vadd.f32 0.0, %v1061
        %v1063 = vpop.f32.mrb[0].mxu0
        %v1064 = vadd.f32 0.0, %v1063
        %v1065 = vpop.f32.mrb[0].mxu0
        %v1066 = vadd.f32 0.0, %v1065
        %1067 = vdwg.mxu0
        %v1068 = vmax.f32 %v1030, %v1050
        %v1069 = vmax.f32 %v1040, %v1060
        %v1070 = vmax.f32 %v1068, %v1032
        %v1071 = vmax.f32 %v1069, %v1042
        %v1072 = vmax.f32 %v1070, %v1052
        %v1073 = vmax.f32 %v1071, %v1062
        %v1074 = vmax.f32 %v1072, %v1073
        %v1075 = vmax.f32 %v1034, %v1054
        %v1076 = vmax.f32 %v1044, %v1064
        %v1077 = vmax.f32 %v1075, %v1036
        %v1078 = vmax.f32 %v1076, %v1046
        %v1079 = vmax.f32 %v1077, %v1056
        %v1080 = vmax.f32 %v1078, %v1066
        %v1081 = vmax.f32 %v1079, %v1080
        %v1082 = vsub.f32 %v1030, %v1074
        %v1083 = vsub.f32 %v1034, %v1081
        %v1084 = vsub.f32 %v1040, %v1074
        %v1085 = vsub.f32 %v1044, %v1081
        %v1086 = vsub.f32 %v1050, %v1074
        %v1087 = vsub.f32 %v1054, %v1081
        %v1088 = vsub.f32 %v1060, %v1074
        %v1089 = vsub.f32 %v1064, %v1081
        %v1090 = vsub.f32 %v1032, %v1074
        %v1091 = vsub.f32 %v1036, %v1081
        %v1092 = vsub.f32 %v1042, %v1074
        %v1093 = vsub.f32 %v1046, %v1081
        %v1094 = vsub.f32 %v1052, %v1074
        %v1095 = vsub.f32 %v1056, %v1081
        %v1096 = vsub.f32 %v1062, %v1074
        %v1097 = vsub.f32 %v1066, %v1081
        %v1098 = vmul.f32 %v1082, 1.442695
        %v1099 = vpow.pop %v1098
        %v1100 = vmul.f32 %v1083, 1.442695
        %v1101 = vpow.pop %v1100
        %v1102 = vmul.f32 %v1084, 1.442695
        %v1103 = vpow.pop %v1102
        %v1104 = vmul.f32 %v1085, 1.442695
        %v1105 = vpow.pop %v1104
        %v1106 = vmul.f32 %v1086, 1.442695
        %v1107 = vpow.pop %v1106
        %v1108 = vmul.f32 %v1087, 1.442695
        %v1109 = vpow.pop %v1108
        %v1110 = vmul.f32 %v1088, 1.442695
        %v1111 = vpow.pop %v1110
        %v1112 = vmul.f32 %v1089, 1.442695
        %v1113 = vpow.pop %v1112
        %v1114 = vmul.f32 %v1090, 1.442695
        %v1115 = vpow.pop %v1114
        %v1116 = vmul.f32 %v1091, 1.442695
        %v1117 = vpow.pop %v1116
        %v1118 = vmul.f32 %v1092, 1.442695
        %v1119 = vpow.pop %v1118
        %v1120 = vmul.f32 %v1093, 1.442695
        %v1121 = vpow.pop %v1120
        %v1122 = vmul.f32 %v1094, 1.442695
        %v1123 = vpow.pop %v1122
        %v1124 = vmul.f32 %v1095, 1.442695
        %v1125 = vpow.pop %v1124
        %v1126 = vmul.f32 %v1096, 1.442695
        %v1127 = vpow.pop %v1126
        %v1128 = vmul.f32 %v1097, 1.442695
        %v1129 = vpow.pop %v1128
        %v1130 = vadd.f32 %v1099, %v1103
        %v1131 = vadd.f32 %v1130, %v1107
        %v1132 = vadd.f32 %v1131, %v1111
        %v1133 = vadd.f32 %v1132, %v1115
        %v1134 = vadd.f32 %v1133, %v1119
        %v1135 = vadd.f32 %v1134, %v1123
        %v1136 = vadd.f32 %v1135, %v1127
        %v1137 = vadd.f32 %v1101, %v1105
        %v1138 = vadd.f32 %v1137, %v1109
        %v1139 = vadd.f32 %v1138, %v1113
        %v1140 = vadd.f32 %v1139, %v1117
        %v1141 = vadd.f32 %v1140, %v1121
        %v1142 = vadd.f32 %v1141, %v1125
        %v1143 = vadd.f32 %v1142, %v1129
        %v1144 = vmul.f32 %v1099, %v703
        %v1145 = vmul.f32 %v1101, %v707
        %v1146 = vmul.f32 %v1103, %v713
        %v1147 = vmul.f32 %v1105, %v717
        %v1148 = vmul.f32 %v1107, %v723
        %v1149 = vmul.f32 %v1109, %v727
        %v1150 = vmul.f32 %v1111, %v733
        %v1151 = vmul.f32 %v1113, %v737
        %v1152 = vmul.f32 %v1115, %v743
        %v1153 = vmul.f32 %v1117, %v747
        %v1154 = vmul.f32 %v1119, %v753
        %v1155 = vmul.f32 %v1121, %v757
        %v1156 = vmul.f32 %v1123, %v763
        %v1157 = vmul.f32 %v1125, %v767
        %v1158 = vmul.f32 %v1127, %v773
        %v1159 = vmul.f32 %v1129, %v777
        %v1160 = vadd.f32 %v1144, %v1146
        %v1161 = vadd.f32 %v1160, %v1148
        %v1162 = vadd.f32 %v1161, %v1150
        %v1163 = vadd.f32 %v1162, %v1152
        %v1164 = vadd.f32 %v1163, %v1154
        %v1165 = vadd.f32 %v1164, %v1156
        %v1166 = vadd.f32 %v1165, %v1158
        %v1167 = vadd.f32 %v1145, %v1147
        %v1168 = vadd.f32 %v1167, %v1149
        %v1169 = vadd.f32 %v1168, %v1151
        %v1170 = vadd.f32 %v1169, %v1153
        %v1171 = vadd.f32 %v1170, %v1155
        %v1172 = vadd.f32 %v1171, %v1157
        %v1173 = vadd.f32 %v1172, %v1159
        %v1174 = vrcp.pop %v1136
        %v1175 = vrcp.pop %v1143
        %v1176 = vmul.f32 %v1166, %v1174
        %v1177 = vmul.f32 %v1173, %v1175
        %v1178 = vpack.c.bf16 %v1177, %v1176
        %v1179 = vld [vmem:[#allocation7] sm:$0xf]
        %v1180 = vld [vmem:[#allocation7 + $0x4] sm:$0xf]
        %v1181 = vld [vmem:[#allocation7 + $0x8] sm:$0xf]
        %v1182 = vld [vmem:[#allocation7 + $0xc] sm:$0xf]
        %v1183 = vld [vmem:[#allocation7 + $0x10] sm:$0xf]
        %v1184 = vld [vmem:[#allocation7 + $0x14] sm:$0xf]
        %v1185 = vld [vmem:[#allocation7 + $0x18] sm:$0xf]
        %v1186 = vld [vmem:[#allocation7 + $0x1c] sm:$0xf]
        %v1187 = vld [vmem:[#allocation7 + $0x20] sm:$0xf]
        %v1188 = vld [vmem:[#allocation7 + $0x24] sm:$0xf]
        %v1189 = vld [vmem:[#allocation7 + $0x28] sm:$0xf]
        %v1190 = vld [vmem:[#allocation7 + $0x2c] sm:$0xf]
        %v1191 = vld [vmem:[#allocation7 + $0x30] sm:$0xf]
        %v1192 = vld [vmem:[#allocation7 + $0x34] sm:$0xf]
        %v1193 = vld [vmem:[#allocation7 + $0x38] sm:$0xf]
        %v1194 = vld [vmem:[#allocation7 + $0x3c] sm:$0xf]
        %v1195 = vld [vmem:[%s7] sm:$0x1]
        %v1197 = vlaneseq
        %v1198 = vshrl.u32 %v1197, 7
        %v1199 = vsub.s32 0, %v1198
        %v1200 = vrot.slane %v1195, %v1199
        %v1218 = vunpack.c.l.b16 %v1179
        %v1219 = vunpack.c.l.b16 %v1180
        %v1220 = vunpack.c.l.b16 %v1181
        %v1221 = vunpack.c.l.b16 %v1182
        %v1222 = vunpack.c.l.b16 %v1183
        %v1223 = vunpack.c.l.b16 %v1184
        %v1224 = vunpack.c.l.b16 %v1185
        %v1225 = vunpack.c.l.b16 %v1186
        %v1226 = vunpack.c.l.b16 %v1187
        %v1227 = vunpack.c.l.b16 %v1188
        %v1228 = vunpack.c.l.b16 %v1189
        %v1229 = vunpack.c.l.b16 %v1190
        %v1230 = vunpack.c.l.b16 %v1191
        %v1231 = vunpack.c.l.b16 %v1192
        %v1232 = vunpack.c.l.b16 %v1193
        %v1233 = vunpack.c.l.b16 %v1194
        %v1234 = vpack.c.b16 %v1219, %v1218
        %v1235 = vpack.c.b16 %v1221, %v1220
        %v1236 = vpack.c.b16 %v1223, %v1222
        %v1237 = vpack.c.b16 %v1225, %v1224
        %v1238 = vpack.c.b16 %v1227, %v1226
        %v1239 = vpack.c.b16 %v1229, %v1228
        %v1240 = vpack.c.b16 %v1231, %v1230
        %v1241 = vpack.c.b16 %v1233, %v1232
        %1250 = vmatprep.subr.bf16.mxu0 0
        %1251 = vmatpush1.bf16.msra.mxu0 %v1234
        %1252 = vmatprep.subr.bf16.mxu0 0
        %1253 = vmatpush1.bf16.msra.mxu0 %v1235
        %1254 = vmatprep.subr.bf16.mxu0 0
        %1255 = vmatpush1.bf16.msra.mxu0 %v1236
        %1256 = vmatprep.subr.bf16.mxu0 0
        %1257 = vmatpush1.bf16.msra.mxu0 %v1237
        %1258 = vmatprep.subr.bf16.mxu0 0
        %1259 = vmatpush1.bf16.msra.mxu0 %v1238
        %1260 = vmatprep.subr.bf16.mxu0 0
        %1261 = vmatpush1.bf16.msra.mxu0 %v1239
        %1262 = vmatprep.subr.bf16.mxu0 0
        %1263 = vmatpush1.bf16.msra.mxu0 %v1240
        %1264 = vmatprep.subr.bf16.mxu0 0
        %1265 = vmatpush1.bf16.msra.mxu0 %v1241
        %1266 = vmatprep.subr.bf16.mxu0 0
        %1267 = vmatpush1.bf16.msra.mxu0 0
        %1268 = vmatprep.subr.bf16.mxu0 0
        %1269 = vmatpush1.bf16.msra.mxu0 0
        %1270 = vmatprep.subr.bf16.mxu0 0
        %1271 = vmatpush1.bf16.msra.mxu0 0
        %1272 = vmatprep.subr.bf16.mxu0 0
        %1273 = vmatpush1.bf16.msra.mxu0 0
        %1274 = vmatprep.subr.bf16.mxu0 0
        %1275 = vmatpush1.bf16.msra.mxu0 0
        %1276 = vmatprep.subr.bf16.mxu0 0
        %1277 = vmatpush1.bf16.msra.mxu0 0
        %1278 = vmatprep.subr.bf16.mxu0 0
        %1279 = vmatpush1.bf16.msra.mxu0 0
        %1280 = vmatprep.subr.bf16.mxu0 0
        %1281 = vmatpush1.bf16.msra.mxu0 0
        %1282 = vmatprep.mubr.bf16.mxu0 0
        %1283 = vmatmul.mubr.bf16.gmra.mrb[0].mxu0 %v1178
        %v1284 = vpop.f32.mrb[0].mxu0
        %v1285 = vadd.f32 %v1200, %v1284
        %v1286 = vpop.f32.mrb[0].mxu0
        %v1287 = vpop.f32.mrb[0].mxu0
        %v1288 = vadd.f32 %v1200, %v1287
        %v1289 = vpop.f32.mrb[0].mxu0
        %1290 = vdwg.mxu0
        %v1291 = vmax.f32 %v1285, 0.0
        %v1292 = vmax.f32 %v1288, 0.0
        %v1293 = vpack.c.bf16 %v1292, %v1291
        %v1294 = vld [vmem:[%s8] sm:$0xf]
        %v1295 = vld [vmem:[%s8 + $0x4] sm:$0xf]
        %v1296 = vld [vmem:[%s8 + $0x8] sm:$0xf]
        %v1297 = vld [vmem:[%s8 + $0xc] sm:$0xf]
        %v1298 = vld [vmem:[%s8 + $0x10] sm:$0xf]
        %v1299 = vld [vmem:[%s8 + $0x14] sm:$0xf]
        %v1300 = vld [vmem:[%s8 + $0x18] sm:$0xf]
        %v1301 = vld [vmem:[%s8 + $0x1c] sm:$0xf]
        %v1302 = vld [vmem:[%s8 + $0x20] sm:$0xf]
        %v1303 = vld [vmem:[%s8 + $0x24] sm:$0xf]
        %v1304 = vld [vmem:[%s8 + $0x28] sm:$0xf]
        %v1305 = vld [vmem:[%s8 + $0x2c] sm:$0xf]
        %v1306 = vld [vmem:[%s8 + $0x30] sm:$0xf]
        %v1307 = vld [vmem:[%s8 + $0x34] sm:$0xf]
        %v1308 = vld [vmem:[%s8 + $0x38] sm:$0xf]
        %v1309 = vld [vmem:[%s8 + $0x3c] sm:$0xf]
        %v1310 = vld [vmem:[%s9] sm:$0x1]
        %v1312 = vlaneseq
        %v1313 = vshrl.u32 %v1312, 7
        %v1314 = vsub.s32 0, %v1313
        %v1315 = vrot.slane %v1310, %v1314
        %v1333 = vunpack.c.l.b16 %v1294
        %v1334 = vunpack.c.l.b16 %v1295
        %v1335 = vunpack.c.l.b16 %v1296
        %v1336 = vunpack.c.l.b16 %v1297
        %v1337 = vunpack.c.l.b16 %v1298
        %v1338 = vunpack.c.l.b16 %v1299
        %v1339 = vunpack.c.l.b16 %v1300
        %v1340 = vunpack.c.l.b16 %v1301
        %v1341 = vunpack.c.l.b16 %v1302
        %v1342 = vunpack.c.l.b16 %v1303
        %v1343 = vunpack.c.l.b16 %v1304
        %v1344 = vunpack.c.l.b16 %v1305
        %v1345 = vunpack.c.l.b16 %v1306
        %v1346 = vunpack.c.l.b16 %v1307
        %v1347 = vunpack.c.l.b16 %v1308
        %v1348 = vunpack.c.l.b16 %v1309
        %v1349 = vpack.c.b16 %v1334, %v1333
        %v1350 = vpack.c.b16 %v1336, %v1335
        %v1351 = vpack.c.b16 %v1338, %v1337
        %v1352 = vpack.c.b16 %v1340, %v1339
        %v1353 = vpack.c.b16 %v1342, %v1341
        %v1354 = vpack.c.b16 %v1344, %v1343
        %v1355 = vpack.c.b16 %v1346, %v1345
        %v1356 = vpack.c.b16 %v1348, %v1347
        %1365 = vmatprep.subr.bf16.mxu0 0
        %1366 = vmatpush1.bf16.msra.mxu0 %v1349
        %1367 = vmatprep.subr.bf16.mxu0 0
        %1368 = vmatpush1.bf16.msra.mxu0 %v1350
        %1369 = vmatprep.subr.bf16.mxu0 0
        %1370 = vmatpush1.bf16.msra.mxu0 %v1351
        %1371 = vmatprep.subr.bf16.mxu0 0
        %1372 = vmatpush1.bf16.msra.mxu0 %v1352
        %1373 = vmatprep.subr.bf16.mxu0 0
        %1374 = vmatpush1.bf16.msra.mxu0 %v1353
        %1375 = vmatprep.subr.bf16.mxu0 0
        %1376 = vmatpush1.bf16.msra.mxu0 %v1354
        %1377 = vmatprep.subr.bf16.mxu0 0
        %1378 = vmatpush1.bf16.msra.mxu0 %v1355
        %1379 = vmatprep.subr.bf16.mxu0 0
        %1380 = vmatpush1.bf16.msra.mxu0 %v1356
        %1381 = vmatprep.subr.bf16.mxu0 0
        %1382 = vmatpush1.bf16.msra.mxu0 0
        %1383 = vmatprep.subr.bf16.mxu0 0
        %1384 = vmatpush1.bf16.msra.mxu0 0
        %1385 = vmatprep.subr.bf16.mxu0 0
        %1386 = vmatpush1.bf16.msra.mxu0 0
        %1387 = vmatprep.subr.bf16.mxu0 0
        %1388 = vmatpush1.bf16.msra.mxu0 0
        %1389 = vmatprep.subr.bf16.mxu0 0
        %1390 = vmatpush1.bf16.msra.mxu0 0
        %1391 = vmatprep.subr.bf16.mxu0 0
        %1392 = vmatpush1.bf16.msra.mxu0 0
        %1393 = vmatprep.subr.bf16.mxu0 0
        %1394 = vmatpush1.bf16.msra.mxu0 0
        %1395 = vmatprep.subr.bf16.mxu0 0
        %1396 = vmatpush1.bf16.msra.mxu0 0
        %1397 = vmatprep.mubr.bf16.mxu0 0
        %1398 = vmatmul.mubr.bf16.gmra.mrb[0].mxu0 %v1293
        %v1399 = vpop.f32.mrb[0].mxu0
        %v1400 = vadd.f32 %v1315, %v1399
        %v1401 = vpop.f32.mrb[0].mxu0
        %v1402 = vpop.f32.mrb[0].mxu0
        %v1403 = vadd.f32 %v1315, %v1402
        %v1404 = vpop.f32.mrb[0].mxu0
        %1405 = vdwg.mxu0
        %1407 = vrot.lane.b32.xlu0 %v1403, 64
        %v1408 = vpop.permute.xlu0 %1407
        %v1410 = vsel %vm497, %v1400, %v1408
        %1411 = vst [vmem:[%s431] sm:$0xff] %v1410
        %s1412 = sand.u32 %s251, 1
        %s1413 = scalar_lea.sflag [#allocation4], %s1412
        %s1414 = sand.u32 %s251, 1
        %s1415 = smul.addr %s1414, 8
        %s1416 = scalar_lea.vmem [#allocation8], %s1415
        // Predicated region
        $region73: #{tpu_custom_call.1} parent=59 // pred_check
          %p1417 = pneg %p261
        $region74: #{tpu_custom_call.1} parent=59 // pred_check_branch
          %1419 = sbr.rel (%p1417) target = $region76
        $region75: #{tpu_custom_call.1} parent=59 // pred_region
          %s1421 = ssub.s32 128, 128
          %1422 = vsyncadd %s1413, %s1421
          %s1423 = smul.addr %s28, 128
          %s1424 = scalar_lea.hbm %s10, %s1423
          %s1426 = sshll.u32 %s1416, 4
          %s1427 = int_to_ptr.vmem [resolvable:$true] %s1426
          %1429 = dma.vmem_to_hbm [thread:$0]  %s1427, 128, %s1424, %s1413
        $region76: #{tpu_custom_call.1} parent=59 // pred_fallthru
          _
      $region60: #{tpu_custom_call.1} parent=5 // pred_fallthru
        _
      %p1430 = scmp.le.s32.totalorder 2, %s23
      // Predicated region
      $region77: #{tpu_custom_call.1} parent=5 // pred_check
        %p1431 = pneg %p1430
      $region78: #{tpu_custom_call.1} parent=5 // pred_check_branch
        %1433 = sbr.rel (%p1431) target = $region80
      $region79: #{tpu_custom_call.1} parent=5 // pred_region
        %s1434 = ssub.s32 %s23, 2
        // Predicated region
        $region81: #{tpu_custom_call.1} parent=79 // pred_check
          %p1435 = pneg %p267
        $region82: #{tpu_custom_call.1} parent=79 // pred_check_branch
          %1437 = sbr.rel (%p1435) target = $region84
        $region83: #{tpu_custom_call.1} parent=79 // pred_region
          %s1438 = sand.u32 %s252, 1
          %s1439 = scalar_lea.sflag [#allocation4], %s1438
          %s1440 = sand.u32 %s252, 1
          %s1441 = smul.addr %s1440, 8
          %s1442 = scalar_lea.vmem [#allocation8], %s1441
          %1443 = dma.done %s1439, 128
        $region84: #{tpu_custom_call.1} parent=79 // pred_fallthru
          _
      $region80: #{tpu_custom_call.1} parent=5 // pred_fallthru
        _
    $region6: #{tpu_custom_call.1} parent=1 // loop_footer
      %s27 = sadd.s32 1, %s23
    $region7: #{tpu_custom_call.1} parent=1 // loop_footer_branch
      %22 = sbr.rel target = $region3
    $region8: #{tpu_custom_call.1} parent=1 // loop_exit
      _
    %1444 = vsyncpa [#allocation3], 1
    %s1445 = scalar_lea.sflag [#allocation3], 1
    %1446 = vsyncpa %s1445, 1
    %1447 = vsyncpa [#allocation6], 1
    %1448 = vsyncpa [#allocation4], 1
    %s1449 = scalar_lea.sflag [#allocation4], 1
    %1450 = vsyncpa %s1449, 1

</llo_original>
